<compile_context>
chip_gen: v6e
topology: v6e:2x2x1
jax: 0.10.0
libtpu: 0.0.40
codegen_flags: <defaults>
</compile_context>

<pallas_src>
import functools

import jax
import jax.numpy as jnp
from jax.experimental import pallas as pl
from jax.experimental.pallas import tpu as pltpu


def _round_up(a, b):
    return (a + b - 1) // b * b


def _mlp_kernel_factory(x_dim, y_dim, h_dim, n_layers):
    """Kernel body for a fixed (static) layer count; slices weights from z."""
    n_mid = n_layers - 2
    w0_size = x_dim * h_dim
    wi_size = h_dim * h_dim

    def _layer(z_ref, x, w_off, in_dim, out_dim, relu):
        # Bias slab directly after the weight slab of this layer.
        b_off = w_off + in_dim * out_dim
        acc = z_ref[:, b_off:b_off + out_dim].astype(jnp.float32)   # (tn, out)
        # acc += x[:, i] * W[i, :]   (static unroll; in_dim is small)
        for i in range(in_dim):
            w_i = z_ref[:, w_off + i * out_dim:w_off + (i + 1) * out_dim]
            acc = acc + x[:, i:i + 1] * w_i.astype(jnp.float32)
        if relu:
            acc = jnp.maximum(acc, 0.0)
        return acc

    def kernel(x_ref, z_ref, o_ref):
        x = x_ref[...].astype(jnp.float32)                           # (tn, x_dim)
        y = _layer(z_ref, x, 0, x_dim, h_dim, relu=True)
        off = w0_size + h_dim
        for _ in range(n_mid):                                       # static unroll
            y = _layer(z_ref, y, off, h_dim, h_dim, relu=True)
            off += wi_size + h_dim
        out = _layer(z_ref, y, off, h_dim, y_dim, relu=False)
        o_ref[...] = out.astype(o_ref.dtype)

    return kernel


def mlp_predictor_forward(x_dict, z_dict, *, x_dim, y_dim, h_dim, n_layers,
                          x_key="x", z_key="z", y_key="y", tn=256,
                          vmem_budget_bytes=24 * 1024 * 1024):
    """Pallas equivalent of MLPPredictor.forward."""
    x = x_dict[x_key]          # (S, T, x_dim)
    z = z_dict[z_key]          # (S, T, z_dim)
    assert n_layers >= 2
    S, T, _ = x.shape
    z_dim = z.shape[-1]
    expected_z = ((x_dim + 1) * h_dim
                  + (n_layers - 2) * (h_dim + 1) * h_dim
                  + (h_dim + 1) * y_dim)
    assert z_dim == expected_z, "z last dim inconsistent with MLP sizes"
    N = S * T

    # Free reshapes (contiguous); no weight slicing / stacking in the wrapper.
    x_flat = x.reshape(N, x_dim)
    z_flat = z.reshape(N, z_dim)

    # ---- batch tile: as large as the (double-buffered) VMEM budget allows ----
    row_bytes = (x_dim * x.dtype.itemsize
                 + z_dim * z.dtype.itemsize
                 + y_dim * x.dtype.itemsize)
    max_tn = max(8, (vmem_budget_bytes // (2 * row_bytes)) // 8 * 8)
    tn = max(8, min(tn, max_tn) // 8 * 8)
    tn = min(tn, _round_up(N, 8))
    N_pad = _round_up(N, tn)
    if N_pad != N:
        # Only pays an extra copy when N is not a multiple of the tile.
        x_flat = jnp.pad(x_flat, ((0, N_pad - N), (0, 0)))
        z_flat = jnp.pad(z_flat, ((0, N_pad - N), (0, 0)))

    grid = (N_pad // tn,)
    out = pl.pallas_call(
        _mlp_kernel_factory(x_dim, y_dim, h_dim, n_layers),
        out_shape=jax.ShapeDtypeStruct((N_pad, y_dim), x.dtype),
        grid=grid,
        in_specs=[
            pl.BlockSpec((tn, x_dim), lambda i: (i, 0)),
            pl.BlockSpec((tn, z_dim), lambda i: (i, 0)),
        ],
        out_specs=pl.BlockSpec((tn, y_dim), lambda i: (i, 0)),
        compiler_params=pltpu.CompilerParams(
            dimension_semantics=("parallel",)),
    )(x_flat, z_flat)

    return {y_key: out[:N].reshape(S, T, y_dim)}


def mlp_predictor_reference(x_dict, z_dict, *, x_dim, y_dim, h_dim, n_layers,
                            x_key="x", z_key="z", y_key="y"):
    """Pure-JAX reproduction of the PyTorch forward (for verification)."""
    x = x_dict[x_key]
    z = z_dict[z_key]
    w0_size = x_dim * h_dim
    wi_size = h_dim * h_dim
    w_last_size = h_dim * y_dim
    lead = z.shape[:-1]
    w0 = z[..., :w0_size].reshape(*lead, x_dim, h_dim)
    b0 = z[..., w0_size:w0_size + h_dim]
    base = w0_size + h_dim
    ws, bs = [], []
    for i in range(n_layers - 2):
        off = base + i * (wi_size + h_dim)
        ws.append(z[..., off:off + wi_size].reshape(*lead, h_dim, h_dim))
        bs.append(z[..., off + wi_size:off + wi_size + h_dim])
    w_last = z[..., -(w_last_size + y_dim):-y_dim].reshape(*lead, h_dim, y_dim)
    b_last = z[..., -y_dim:]
    y = jax.nn.relu(jnp.einsum("sbi,sbij->sbj", x, w0) + b0)
    for i in range(n_layers - 2):
        y = jax.nn.relu(jnp.einsum("sbi,sbij->sbj", y, ws[i]) + bs[i])
    y = jnp.einsum("sbi,sbij->sbj", y, w_last) + b_last
    return {y_key: y}


def _z_dim(x_dim, y_dim, h_dim, n_layers):
    return ((x_dim + 1) * h_dim
            + (n_layers - 2) * (h_dim + 1) * h_dim
            + (h_dim + 1) * y_dim)


def _run_case(key, S, T, x_dim, y_dim, h_dim, n_layers):
    kx, kz = jax.random.split(key)
    x = jax.random.normal(kx, (S, T, x_dim), dtype=jnp.float32)
    z = 0.1 * jax.random.normal(
        kz, (S, T, _z_dim(x_dim, y_dim, h_dim, n_layers)), dtype=jnp.float32)

    fwd = functools.partial(
        mlp_predictor_forward,
        x_dim=x_dim, y_dim=y_dim, h_dim=h_dim, n_layers=n_layers)
    y = jax.block_until_ready(fwd({"x": x}, {"z": z})["y"])

    ref = mlp_predictor_reference(
        {"x": x}, {"z": z},
        x_dim=x_dim, y_dim=y_dim, h_dim=h_dim, n_layers=n_layers)["y"]
    assert y.shape == (S, T, y_dim)
    assert jnp.allclose(y, ref, atol=1e-5, rtol=1e-5), "mismatch vs reference"


if __name__ == "__main__":
    key = jax.random.PRNGKey(0)
    k1, k2 = jax.random.split(key)
    # Case 1: one hidden layer (n_mid=1), N a multiple of the tile.
    _run_case(k1, S=2, T=8, x_dim=8, y_dim=4, h_dim=32, n_layers=3)
    # Case 2: no hidden layers (n_mid=0), N=15 exercises the padding path.
    _run_case(k2, S=3, T=5, x_dim=8, y_dim=2, h_dim=16, n_layers=2)
    print("KERNEL_OK")
</pallas_src>

<mosaic_0001>
module attributes {stable_mosaic.version = 11 : i64} {
  func.func @kernel(%arg0: i32, %arg1: memref<16x8xf32, #tpu.memory_space<vmem>>, %arg2: memref<16x1476xf32, #tpu.memory_space<vmem>>, %arg3: memref<16x4xf32, #tpu.memory_space<vmem>>) attributes {dimension_semantics = [#tpu.dimension_semantics<parallel>], iteration_bounds = array<i64: 1>, scalar_prefetch = 0 : i64, scratch_operands = 0 : i64, tpu.core_type = #tpu.core_type<tc>, window_params = [{transform_indices = @transform_0, window_bounds = array<i64: 16, 8>}, {transform_indices = @transform_1, window_bounds = array<i64: 16, 1476>}, {transform_indices = @transform_2, window_bounds = array<i64: 16, 4>}]} {
    %c0 = arith.constant 0 : index
    %c0_0 = arith.constant 0 : index
    %0 = vector.load %arg1[%c0, %c0_0] : memref<16x8xf32, #tpu.memory_space<vmem>>, vector<16x8xf32>
    %c0_1 = arith.constant 0 : index
    %c256 = arith.constant 256 : index
    %1 = vector.load %arg2[%c0_1, %c256] : memref<16x1476xf32, #tpu.memory_space<vmem>>, vector<16x32xf32>
    %c0_2 = arith.constant 0 : index
    %c0_3 = arith.constant 0 : index
    %2 = vector.load %arg2[%c0_2, %c0_3] : memref<16x1476xf32, #tpu.memory_space<vmem>>, vector<16x32xf32>
    %3 = vector.extract_strided_slice %0 {offsets = [0, 0], sizes = [16, 1], strides = [1, 1]} : vector<16x8xf32> to vector<16x1xf32>
    %4 = vector.broadcast %3 : vector<16x1xf32> to vector<16x32xf32>
    %5 = arith.mulf %4, %2 : vector<16x32xf32>
    %6 = arith.addf %1, %5 : vector<16x32xf32>
    %c0_4 = arith.constant 0 : index
    %c32 = arith.constant 32 : index
    %7 = vector.load %arg2[%c0_4, %c32] : memref<16x1476xf32, #tpu.memory_space<vmem>>, vector<16x32xf32>
    %8 = vector.extract_strided_slice %0 {offsets = [0, 1], sizes = [16, 1], strides = [1, 1]} : vector<16x8xf32> to vector<16x1xf32>
    %9 = vector.broadcast %8 : vector<16x1xf32> to vector<16x32xf32>
    %10 = arith.mulf %9, %7 : vector<16x32xf32>
    %11 = arith.addf %6, %10 : vector<16x32xf32>
    %c0_5 = arith.constant 0 : index
    %c64 = arith.constant 64 : index
    %12 = vector.load %arg2[%c0_5, %c64] : memref<16x1476xf32, #tpu.memory_space<vmem>>, vector<16x32xf32>
    %13 = vector.extract_strided_slice %0 {offsets = [0, 2], sizes = [16, 1], strides = [1, 1]} : vector<16x8xf32> to vector<16x1xf32>
    %14 = vector.broadcast %13 : vector<16x1xf32> to vector<16x32xf32>
    %15 = arith.mulf %14, %12 : vector<16x32xf32>
    %16 = arith.addf %11, %15 : vector<16x32xf32>
    %c0_6 = arith.constant 0 : index
    %c96 = arith.constant 96 : index
    %17 = vector.load %arg2[%c0_6, %c96] : memref<16x1476xf32, #tpu.memory_space<vmem>>, vector<16x32xf32>
    %18 = vector.extract_strided_slice %0 {offsets = [0, 3], sizes = [16, 1], strides = [1, 1]} : vector<16x8xf32> to vector<16x1xf32>
    %19 = vector.broadcast %18 : vector<16x1xf32> to vector<16x32xf32>
    %20 = arith.mulf %19, %17 : vector<16x32xf32>
    %21 = arith.addf %16, %20 : vector<16x32xf32>
    %c0_7 = arith.constant 0 : index
    %c128 = arith.constant 128 : index
    %22 = vector.load %arg2[%c0_7, %c128] : memref<16x1476xf32, #tpu.memory_space<vmem>>, vector<16x32xf32>
    %23 = vector.extract_strided_slice %0 {offsets = [0, 4], sizes = [16, 1], strides = [1, 1]} : vector<16x8xf32> to vector<16x1xf32>
    %24 = vector.broadcast %23 : vector<16x1xf32> to vector<16x32xf32>
    %25 = arith.mulf %24, %22 : vector<16x32xf32>
    %26 = arith.addf %21, %25 : vector<16x32xf32>
    %c0_8 = arith.constant 0 : index
    %c160 = arith.constant 160 : index
    %27 = vector.load %arg2[%c0_8, %c160] : memref<16x1476xf32, #tpu.memory_space<vmem>>, vector<16x32xf32>
    %28 = vector.extract_strided_slice %0 {offsets = [0, 5], sizes = [16, 1], strides = [1, 1]} : vector<16x8xf32> to vector<16x1xf32>
    %29 = vector.broadcast %28 : vector<16x1xf32> to vector<16x32xf32>
    %30 = arith.mulf %29, %27 : vector<16x32xf32>
    %31 = arith.addf %26, %30 : vector<16x32xf32>
    %c0_9 = arith.constant 0 : index
    %c192 = arith.constant 192 : index
    %32 = vector.load %arg2[%c0_9, %c192] : memref<16x1476xf32, #tpu.memory_space<vmem>>, vector<16x32xf32>
    %33 = vector.extract_strided_slice %0 {offsets = [0, 6], sizes = [16, 1], strides = [1, 1]} : vector<16x8xf32> to vector<16x1xf32>
    %34 = vector.broadcast %33 : vector<16x1xf32> to vector<16x32xf32>
    %35 = arith.mulf %34, %32 : vector<16x32xf32>
    %36 = arith.addf %31, %35 : vector<16x32xf32>
    %c0_10 = arith.constant 0 : index
    %c224 = arith.constant 224 : index
    %37 = vector.load %arg2[%c0_10, %c224] : memref<16x1476xf32, #tpu.memory_space<vmem>>, vector<16x32xf32>
    %38 = vector.extract_strided_slice %0 {offsets = [0, 7], sizes = [16, 1], strides = [1, 1]} : vector<16x8xf32> to vector<16x1xf32>
    %39 = vector.broadcast %38 : vector<16x1xf32> to vector<16x32xf32>
    %40 = arith.mulf %39, %37 : vector<16x32xf32>
    %41 = arith.addf %36, %40 : vector<16x32xf32>
    %cst = arith.constant 0.000000e+00 : f32
    %42 = vector.broadcast %cst : f32 to vector<16x32xf32>
    %43 = arith.maximumf %41, %42 : vector<16x32xf32>
    %c0_11 = arith.constant 0 : index
    %c1312 = arith.constant 1312 : index
    %44 = vector.load %arg2[%c0_11, %c1312] : memref<16x1476xf32, #tpu.memory_space<vmem>>, vector<16x32xf32>
    %c0_12 = arith.constant 0 : index
    %c288 = arith.constant 288 : index
    %45 = vector.load %arg2[%c0_12, %c288] : memref<16x1476xf32, #tpu.memory_space<vmem>>, vector<16x32xf32>
    %46 = vector.extract_strided_slice %43 {offsets = [0, 0], sizes = [16, 1], strides = [1, 1]} : vector<16x32xf32> to vector<16x1xf32>
    %47 = vector.broadcast %46 : vector<16x1xf32> to vector<16x32xf32>
    %48 = arith.mulf %47, %45 : vector<16x32xf32>
    %49 = arith.addf %44, %48 : vector<16x32xf32>
    %c0_13 = arith.constant 0 : index
    %c320 = arith.constant 320 : index
    %50 = vector.load %arg2[%c0_13, %c320] : memref<16x1476xf32, #tpu.memory_space<vmem>>, vector<16x32xf32>
    %51 = vector.extract_strided_slice %43 {offsets = [0, 1], sizes = [16, 1], strides = [1, 1]} : vector<16x32xf32> to vector<16x1xf32>
    %52 = vector.broadcast %51 : vector<16x1xf32> to vector<16x32xf32>
    %53 = arith.mulf %52, %50 : vector<16x32xf32>
    %54 = arith.addf %49, %53 : vector<16x32xf32>
    %c0_14 = arith.constant 0 : index
    %c352 = arith.constant 352 : index
    %55 = vector.load %arg2[%c0_14, %c352] : memref<16x1476xf32, #tpu.memory_space<vmem>>, vector<16x32xf32>
    %56 = vector.extract_strided_slice %43 {offsets = [0, 2], sizes = [16, 1], strides = [1, 1]} : vector<16x32xf32> to vector<16x1xf32>
    %57 = vector.broadcast %56 : vector<16x1xf32> to vector<16x32xf32>
    %58 = arith.mulf %57, %55 : vector<16x32xf32>
    %59 = arith.addf %54, %58 : vector<16x32xf32>
    %c0_15 = arith.constant 0 : index
    %c384 = arith.constant 384 : index
    %60 = vector.load %arg2[%c0_15, %c384] : memref<16x1476xf32, #tpu.memory_space<vmem>>, vector<16x32xf32>
    %61 = vector.extract_strided_slice %43 {offsets = [0, 3], sizes = [16, 1], strides = [1, 1]} : vector<16x32xf32> to vector<16x1xf32>
    %62 = vector.broadcast %61 : vector<16x1xf32> to vector<16x32xf32>
    %63 = arith.mulf %62, %60 : vector<16x32xf32>
    %64 = arith.addf %59, %63 : vector<16x32xf32>
    %c0_16 = arith.constant 0 : index
    %c416 = arith.constant 416 : index
    %65 = vector.load %arg2[%c0_16, %c416] : memref<16x1476xf32, #tpu.memory_space<vmem>>, vector<16x32xf32>
    %66 = vector.extract_strided_slice %43 {offsets = [0, 4], sizes = [16, 1], strides = [1, 1]} : vector<16x32xf32> to vector<16x1xf32>
    %67 = vector.broadcast %66 : vector<16x1xf32> to vector<16x32xf32>
    %68 = arith.mulf %67, %65 : vector<16x32xf32>
    %69 = arith.addf %64, %68 : vector<16x32xf32>
    %c0_17 = arith.constant 0 : index
    %c448 = arith.constant 448 : index
    %70 = vector.load %arg2[%c0_17, %c448] : memref<16x1476xf32, #tpu.memory_space<vmem>>, vector<16x32xf32>
    %71 = vector.extract_strided_slice %43 {offsets = [0, 5], sizes = [16, 1], strides = [1, 1]} : vector<16x32xf32> to vector<16x1xf32>
    %72 = vector.broadcast %71 : vector<16x1xf32> to vector<16x32xf32>
    %73 = arith.mulf %72, %70 : vector<16x32xf32>
    %74 = arith.addf %69, %73 : vector<16x32xf32>
    %c0_18 = arith.constant 0 : index
    %c480 = arith.constant 480 : index
    %75 = vector.load %arg2[%c0_18, %c480] : memref<16x1476xf32, #tpu.memory_space<vmem>>, vector<16x32xf32>
    %76 = vector.extract_strided_slice %43 {offsets = [0, 6], sizes = [16, 1], strides = [1, 1]} : vector<16x32xf32> to vector<16x1xf32>
    %77 = vector.broadcast %76 : vector<16x1xf32> to vector<16x32xf32>
    %78 = arith.mulf %77, %75 : vector<16x32xf32>
    %79 = arith.addf %74, %78 : vector<16x32xf32>
    %c0_19 = arith.constant 0 : index
    %c512 = arith.constant 512 : index
    %80 = vector.load %arg2[%c0_19, %c512] : memref<16x1476xf32, #tpu.memory_space<vmem>>, vector<16x32xf32>
    %81 = vector.extract_strided_slice %43 {offsets = [0, 7], sizes = [16, 1], strides = [1, 1]} : vector<16x32xf32> to vector<16x1xf32>
    %82 = vector.broadcast %81 : vector<16x1xf32> to vector<16x32xf32>
    %83 = arith.mulf %82, %80 : vector<16x32xf32>
    %84 = arith.addf %79, %83 : vector<16x32xf32>
    %c0_20 = arith.constant 0 : index
    %c544 = arith.constant 544 : index
    %85 = vector.load %arg2[%c0_20, %c544] : memref<16x1476xf32, #tpu.memory_space<vmem>>, vector<16x32xf32>
    %86 = vector.extract_strided_slice %43 {offsets = [0, 8], sizes = [16, 1], strides = [1, 1]} : vector<16x32xf32> to vector<16x1xf32>
    %87 = vector.broadcast %86 : vector<16x1xf32> to vector<16x32xf32>
    %88 = arith.mulf %87, %85 : vector<16x32xf32>
    %89 = arith.addf %84, %88 : vector<16x32xf32>
    %c0_21 = arith.constant 0 : index
    %c576 = arith.constant 576 : index
    %90 = vector.load %arg2[%c0_21, %c576] : memref<16x1476xf32, #tpu.memory_space<vmem>>, vector<16x32xf32>
    %91 = vector.extract_strided_slice %43 {offsets = [0, 9], sizes = [16, 1], strides = [1, 1]} : vector<16x32xf32> to vector<16x1xf32>
    %92 = vector.broadcast %91 : vector<16x1xf32> to vector<16x32xf32>
    %93 = arith.mulf %92, %90 : vector<16x32xf32>
    %94 = arith.addf %89, %93 : vector<16x32xf32>
    %c0_22 = arith.constant 0 : index
    %c608 = arith.constant 608 : index
    %95 = vector.load %arg2[%c0_22, %c608] : memref<16x1476xf32, #tpu.memory_space<vmem>>, vector<16x32xf32>
    %96 = vector.extract_strided_slice %43 {offsets = [0, 10], sizes = [16, 1], strides = [1, 1]} : vector<16x32xf32> to vector<16x1xf32>
    %97 = vector.broadcast %96 : vector<16x1xf32> to vector<16x32xf32>
    %98 = arith.mulf %97, %95 : vector<16x32xf32>
    %99 = arith.addf %94, %98 : vector<16x32xf32>
    %c0_23 = arith.constant 0 : index
    %c640 = arith.constant 640 : index
    %100 = vector.load %arg2[%c0_23, %c640] : memref<16x1476xf32, #tpu.memory_space<vmem>>, vector<16x32xf32>
    %101 = vector.extract_strided_slice %43 {offsets = [0, 11], sizes = [16, 1], strides = [1, 1]} : vector<16x32xf32> to vector<16x1xf32>
    %102 = vector.broadcast %101 : vector<16x1xf32> to vector<16x32xf32>
    %103 = arith.mulf %102, %100 : vector<16x32xf32>
    %104 = arith.addf %99, %103 : vector<16x32xf32>
    %c0_24 = arith.constant 0 : index
    %c672 = arith.constant 672 : index
    %105 = vector.load %arg2[%c0_24, %c672] : memref<16x1476xf32, #tpu.memory_space<vmem>>, vector<16x32xf32>
    %106 = vector.extract_strided_slice %43 {offsets = [0, 12], sizes = [16, 1], strides = [1, 1]} : vector<16x32xf32> to vector<16x1xf32>
    %107 = vector.broadcast %106 : vector<16x1xf32> to vector<16x32xf32>
    %108 = arith.mulf %107, %105 : vector<16x32xf32>
    %109 = arith.addf %104, %108 : vector<16x32xf32>
    %c0_25 = arith.constant 0 : index
    %c704 = arith.constant 704 : index
    %110 = vector.load %arg2[%c0_25, %c704] : memref<16x1476xf32, #tpu.memory_space<vmem>>, vector<16x32xf32>
    %111 = vector.extract_strided_slice %43 {offsets = [0, 13], sizes = [16, 1], strides = [1, 1]} : vector<16x32xf32> to vector<16x1xf32>
    %112 = vector.broadcast %111 : vector<16x1xf32> to vector<16x32xf32>
    %113 = arith.mulf %112, %110 : vector<16x32xf32>
    %114 = arith.addf %109, %113 : vector<16x32xf32>
    %c0_26 = arith.constant 0 : index
    %c736 = arith.constant 736 : index
    %115 = vector.load %arg2[%c0_26, %c736] : memref<16x1476xf32, #tpu.memory_space<vmem>>, vector<16x32xf32>
    %116 = vector.extract_strided_slice %43 {offsets = [0, 14], sizes = [16, 1], strides = [1, 1]} : vector<16x32xf32> to vector<16x1xf32>
    %117 = vector.broadcast %116 : vector<16x1xf32> to vector<16x32xf32>
    %118 = arith.mulf %117, %115 : vector<16x32xf32>
    %119 = arith.addf %114, %118 : vector<16x32xf32>
    %c0_27 = arith.constant 0 : index
    %c768 = arith.constant 768 : index
    %120 = vector.load %arg2[%c0_27, %c768] : memref<16x1476xf32, #tpu.memory_space<vmem>>, vector<16x32xf32>
    %121 = vector.extract_strided_slice %43 {offsets = [0, 15], sizes = [16, 1], strides = [1, 1]} : vector<16x32xf32> to vector<16x1xf32>
    %122 = vector.broadcast %121 : vector<16x1xf32> to vector<16x32xf32>
    %123 = arith.mulf %122, %120 : vector<16x32xf32>
    %124 = arith.addf %119, %123 : vector<16x32xf32>
    %c0_28 = arith.constant 0 : index
    %c800 = arith.constant 800 : index
    %125 = vector.load %arg2[%c0_28, %c800] : memref<16x1476xf32, #tpu.memory_space<vmem>>, vector<16x32xf32>
    %126 = vector.extract_strided_slice %43 {offsets = [0, 16], sizes = [16, 1], strides = [1, 1]} : vector<16x32xf32> to vector<16x1xf32>
    %127 = vector.broadcast %126 : vector<16x1xf32> to vector<16x32xf32>
    %128 = arith.mulf %127, %125 : vector<16x32xf32>
    %129 = arith.addf %124, %128 : vector<16x32xf32>
    %c0_29 = arith.constant 0 : index
    %c832 = arith.constant 832 : index
    %130 = vector.load %arg2[%c0_29, %c832] : memref<16x1476xf32, #tpu.memory_space<vmem>>, vector<16x32xf32>
    %131 = vector.extract_strided_slice %43 {offsets = [0, 17], sizes = [16, 1], strides = [1, 1]} : vector<16x32xf32> to vector<16x1xf32>
    %132 = vector.broadcast %131 : vector<16x1xf32> to vector<16x32xf32>
    %133 = arith.mulf %132, %130 : vector<16x32xf32>
    %134 = arith.addf %129, %133 : vector<16x32xf32>
    %c0_30 = arith.constant 0 : index
    %c864 = arith.constant 864 : index
    %135 = vector.load %arg2[%c0_30, %c864] : memref<16x1476xf32, #tpu.memory_space<vmem>>, vector<16x32xf32>
    %136 = vector.extract_strided_slice %43 {offsets = [0, 18], sizes = [16, 1], strides = [1, 1]} : vector<16x32xf32> to vector<16x1xf32>
    %137 = vector.broadcast %136 : vector<16x1xf32> to vector<16x32xf32>
    %138 = arith.mulf %137, %135 : vector<16x32xf32>
    %139 = arith.addf %134, %138 : vector<16x32xf32>
    %c0_31 = arith.constant 0 : index
    %c896 = arith.constant 896 : index
    %140 = vector.load %arg2[%c0_31, %c896] : memref<16x1476xf32, #tpu.memory_space<vmem>>, vector<16x32xf32>
    %141 = vector.extract_strided_slice %43 {offsets = [0, 19], sizes = [16, 1], strides = [1, 1]} : vector<16x32xf32> to vector<16x1xf32>
    %142 = vector.broadcast %141 : vector<16x1xf32> to vector<16x32xf32>
    %143 = arith.mulf %142, %140 : vector<16x32xf32>
    %144 = arith.addf %139, %143 : vector<16x32xf32>
    %c0_32 = arith.constant 0 : index
    %c928 = arith.constant 928 : index
    %145 = vector.load %arg2[%c0_32, %c928] : memref<16x1476xf32, #tpu.memory_space<vmem>>, vector<16x32xf32>
    %146 = vector.extract_strided_slice %43 {offsets = [0, 20], sizes = [16, 1], strides = [1, 1]} : vector<16x32xf32> to vector<16x1xf32>
    %147 = vector.broadcast %146 : vector<16x1xf32> to vector<16x32xf32>
    %148 = arith.mulf %147, %145 : vector<16x32xf32>
    %149 = arith.addf %144, %148 : vector<16x32xf32>
    %c0_33 = arith.constant 0 : index
    %c960 = arith.constant 960 : index
    %150 = vector.load %arg2[%c0_33, %c960] : memref<16x1476xf32, #tpu.memory_space<vmem>>, vector<16x32xf32>
    %151 = vector.extract_strided_slice %43 {offsets = [0, 21], sizes = [16, 1], strides = [1, 1]} : vector<16x32xf32> to vector<16x1xf32>
    %152 = vector.broadcast %151 : vector<16x1xf32> to vector<16x32xf32>
    %153 = arith.mulf %152, %150 : vector<16x32xf32>
    %154 = arith.addf %149, %153 : vector<16x32xf32>
    %c0_34 = arith.constant 0 : index
    %c992 = arith.constant 992 : index
    %155 = vector.load %arg2[%c0_34, %c992] : memref<16x1476xf32, #tpu.memory_space<vmem>>, vector<16x32xf32>
    %156 = vector.extract_strided_slice %43 {offsets = [0, 22], sizes = [16, 1], strides = [1, 1]} : vector<16x32xf32> to vector<16x1xf32>
    %157 = vector.broadcast %156 : vector<16x1xf32> to vector<16x32xf32>
    %158 = arith.mulf %157, %155 : vector<16x32xf32>
    %159 = arith.addf %154, %158 : vector<16x32xf32>
    %c0_35 = arith.constant 0 : index
    %c1024 = arith.constant 1024 : index
    %160 = vector.load %arg2[%c0_35, %c1024] : memref<16x1476xf32, #tpu.memory_space<vmem>>, vector<16x32xf32>
    %161 = vector.extract_strided_slice %43 {offsets = [0, 23], sizes = [16, 1], strides = [1, 1]} : vector<16x32xf32> to vector<16x1xf32>
    %162 = vector.broadcast %161 : vector<16x1xf32> to vector<16x32xf32>
    %163 = arith.mulf %162, %160 : vector<16x32xf32>
    %164 = arith.addf %159, %163 : vector<16x32xf32>
    %c0_36 = arith.constant 0 : index
    %c1056 = arith.constant 1056 : index
    %165 = vector.load %arg2[%c0_36, %c1056] : memref<16x1476xf32, #tpu.memory_space<vmem>>, vector<16x32xf32>
    %166 = vector.extract_strided_slice %43 {offsets = [0, 24], sizes = [16, 1], strides = [1, 1]} : vector<16x32xf32> to vector<16x1xf32>
    %167 = vector.broadcast %166 : vector<16x1xf32> to vector<16x32xf32>
    %168 = arith.mulf %167, %165 : vector<16x32xf32>
    %169 = arith.addf %164, %168 : vector<16x32xf32>
    %c0_37 = arith.constant 0 : index
    %c1088 = arith.constant 1088 : index
    %170 = vector.load %arg2[%c0_37, %c1088] : memref<16x1476xf32, #tpu.memory_space<vmem>>, vector<16x32xf32>
    %171 = vector.extract_strided_slice %43 {offsets = [0, 25], sizes = [16, 1], strides = [1, 1]} : vector<16x32xf32> to vector<16x1xf32>
    %172 = vector.broadcast %171 : vector<16x1xf32> to vector<16x32xf32>
    %173 = arith.mulf %172, %170 : vector<16x32xf32>
    %174 = arith.addf %169, %173 : vector<16x32xf32>
    %c0_38 = arith.constant 0 : index
    %c1120 = arith.constant 1120 : index
    %175 = vector.load %arg2[%c0_38, %c1120] : memref<16x1476xf32, #tpu.memory_space<vmem>>, vector<16x32xf32>
    %176 = vector.extract_strided_slice %43 {offsets = [0, 26], sizes = [16, 1], strides = [1, 1]} : vector<16x32xf32> to vector<16x1xf32>
    %177 = vector.broadcast %176 : vector<16x1xf32> to vector<16x32xf32>
    %178 = arith.mulf %177, %175 : vector<16x32xf32>
    %179 = arith.addf %174, %178 : vector<16x32xf32>
    %c0_39 = arith.constant 0 : index
    %c1152 = arith.constant 1152 : index
    %180 = vector.load %arg2[%c0_39, %c1152] : memref<16x1476xf32, #tpu.memory_space<vmem>>, vector<16x32xf32>
    %181 = vector.extract_strided_slice %43 {offsets = [0, 27], sizes = [16, 1], strides = [1, 1]} : vector<16x32xf32> to vector<16x1xf32>
    %182 = vector.broadcast %181 : vector<16x1xf32> to vector<16x32xf32>
    %183 = arith.mulf %182, %180 : vector<16x32xf32>
    %184 = arith.addf %179, %183 : vector<16x32xf32>
    %c0_40 = arith.constant 0 : index
    %c1184 = arith.constant 1184 : index
    %185 = vector.load %arg2[%c0_40, %c1184] : memref<16x1476xf32, #tpu.memory_space<vmem>>, vector<16x32xf32>
    %186 = vector.extract_strided_slice %43 {offsets = [0, 28], sizes = [16, 1], strides = [1, 1]} : vector<16x32xf32> to vector<16x1xf32>
    %187 = vector.broadcast %186 : vector<16x1xf32> to vector<16x32xf32>
    %188 = arith.mulf %187, %185 : vector<16x32xf32>
    %189 = arith.addf %184, %188 : vector<16x32xf32>
    %c0_41 = arith.constant 0 : index
    %c1216 = arith.constant 1216 : index
    %190 = vector.load %arg2[%c0_41, %c1216] : memref<16x1476xf32, #tpu.memory_space<vmem>>, vector<16x32xf32>
    %191 = vector.extract_strided_slice %43 {offsets = [0, 29], sizes = [16, 1], strides = [1, 1]} : vector<16x32xf32> to vector<16x1xf32>
    %192 = vector.broadcast %191 : vector<16x1xf32> to vector<16x32xf32>
    %193 = arith.mulf %192, %190 : vector<16x32xf32>
    %194 = arith.addf %189, %193 : vector<16x32xf32>
    %c0_42 = arith.constant 0 : index
    %c1248 = arith.constant 1248 : index
    %195 = vector.load %arg2[%c0_42, %c1248] : memref<16x1476xf32, #tpu.memory_space<vmem>>, vector<16x32xf32>
    %196 = vector.extract_strided_slice %43 {offsets = [0, 30], sizes = [16, 1], strides = [1, 1]} : vector<16x32xf32> to vector<16x1xf32>
    %197 = vector.broadcast %196 : vector<16x1xf32> to vector<16x32xf32>
    %198 = arith.mulf %197, %195 : vector<16x32xf32>
    %199 = arith.addf %194, %198 : vector<16x32xf32>
    %c0_43 = arith.constant 0 : index
    %c1280 = arith.constant 1280 : index
    %200 = vector.load %arg2[%c0_43, %c1280] : memref<16x1476xf32, #tpu.memory_space<vmem>>, vector<16x32xf32>
    %201 = vector.extract_strided_slice %43 {offsets = [0, 31], sizes = [16, 1], strides = [1, 1]} : vector<16x32xf32> to vector<16x1xf32>
    %202 = vector.broadcast %201 : vector<16x1xf32> to vector<16x32xf32>
    %203 = arith.mulf %202, %200 : vector<16x32xf32>
    %204 = arith.addf %199, %203 : vector<16x32xf32>
    %cst_44 = arith.constant 0.000000e+00 : f32
    %205 = vector.broadcast %cst_44 : f32 to vector<16x32xf32>
    %206 = arith.maximumf %204, %205 : vector<16x32xf32>
    %c0_45 = arith.constant 0 : index
    %c1472 = arith.constant 1472 : index
    %207 = vector.load %arg2[%c0_45, %c1472] : memref<16x1476xf32, #tpu.memory_space<vmem>>, vector<16x4xf32>
    %c0_46 = arith.constant 0 : index
    %c1344 = arith.constant 1344 : index
    %208 = vector.load %arg2[%c0_46, %c1344] : memref<16x1476xf32, #tpu.memory_space<vmem>>, vector<16x4xf32>
    %209 = vector.extract_strided_slice %206 {offsets = [0, 0], sizes = [16, 1], strides = [1, 1]} : vector<16x32xf32> to vector<16x1xf32>
    %210 = vector.broadcast %209 : vector<16x1xf32> to vector<16x4xf32>
    %211 = arith.mulf %210, %208 : vector<16x4xf32>
    %212 = arith.addf %207, %211 : vector<16x4xf32>
    %c0_47 = arith.constant 0 : index
    %c1348 = arith.constant 1348 : index
    %213 = vector.load %arg2[%c0_47, %c1348] : memref<16x1476xf32, #tpu.memory_space<vmem>>, vector<16x4xf32>
    %214 = vector.extract_strided_slice %206 {offsets = [0, 1], sizes = [16, 1], strides = [1, 1]} : vector<16x32xf32> to vector<16x1xf32>
    %215 = vector.broadcast %214 : vector<16x1xf32> to vector<16x4xf32>
    %216 = arith.mulf %215, %213 : vector<16x4xf32>
    %217 = arith.addf %212, %216 : vector<16x4xf32>
    %c0_48 = arith.constant 0 : index
    %c1352 = arith.constant 1352 : index
    %218 = vector.load %arg2[%c0_48, %c1352] : memref<16x1476xf32, #tpu.memory_space<vmem>>, vector<16x4xf32>
    %219 = vector.extract_strided_slice %206 {offsets = [0, 2], sizes = [16, 1], strides = [1, 1]} : vector<16x32xf32> to vector<16x1xf32>
    %220 = vector.broadcast %219 : vector<16x1xf32> to vector<16x4xf32>
    %221 = arith.mulf %220, %218 : vector<16x4xf32>
    %222 = arith.addf %217, %221 : vector<16x4xf32>
    %c0_49 = arith.constant 0 : index
    %c1356 = arith.constant 1356 : index
    %223 = vector.load %arg2[%c0_49, %c1356] : memref<16x1476xf32, #tpu.memory_space<vmem>>, vector<16x4xf32>
    %224 = vector.extract_strided_slice %206 {offsets = [0, 3], sizes = [16, 1], strides = [1, 1]} : vector<16x32xf32> to vector<16x1xf32>
    %225 = vector.broadcast %224 : vector<16x1xf32> to vector<16x4xf32>
    %226 = arith.mulf %225, %223 : vector<16x4xf32>
    %227 = arith.addf %222, %226 : vector<16x4xf32>
    %c0_50 = arith.constant 0 : index
    %c1360 = arith.constant 1360 : index
    %228 = vector.load %arg2[%c0_50, %c1360] : memref<16x1476xf32, #tpu.memory_space<vmem>>, vector<16x4xf32>
    %229 = vector.extract_strided_slice %206 {offsets = [0, 4], sizes = [16, 1], strides = [1, 1]} : vector<16x32xf32> to vector<16x1xf32>
    %230 = vector.broadcast %229 : vector<16x1xf32> to vector<16x4xf32>
    %231 = arith.mulf %230, %228 : vector<16x4xf32>
    %232 = arith.addf %227, %231 : vector<16x4xf32>
    %c0_51 = arith.constant 0 : index
    %c1364 = arith.constant 1364 : index
    %233 = vector.load %arg2[%c0_51, %c1364] : memref<16x1476xf32, #tpu.memory_space<vmem>>, vector<16x4xf32>
    %234 = vector.extract_strided_slice %206 {offsets = [0, 5], sizes = [16, 1], strides = [1, 1]} : vector<16x32xf32> to vector<16x1xf32>
    %235 = vector.broadcast %234 : vector<16x1xf32> to vector<16x4xf32>
    %236 = arith.mulf %235, %233 : vector<16x4xf32>
    %237 = arith.addf %232, %236 : vector<16x4xf32>
    %c0_52 = arith.constant 0 : index
    %c1368 = arith.constant 1368 : index
    %238 = vector.load %arg2[%c0_52, %c1368] : memref<16x1476xf32, #tpu.memory_space<vmem>>, vector<16x4xf32>
    %239 = vector.extract_strided_slice %206 {offsets = [0, 6], sizes = [16, 1], strides = [1, 1]} : vector<16x32xf32> to vector<16x1xf32>
    %240 = vector.broadcast %239 : vector<16x1xf32> to vector<16x4xf32>
    %241 = arith.mulf %240, %238 : vector<16x4xf32>
    %242 = arith.addf %237, %241 : vector<16x4xf32>
    %c0_53 = arith.constant 0 : index
    %c1372 = arith.constant 1372 : index
    %243 = vector.load %arg2[%c0_53, %c1372] : memref<16x1476xf32, #tpu.memory_space<vmem>>, vector<16x4xf32>
    %244 = vector.extract_strided_slice %206 {offsets = [0, 7], sizes = [16, 1], strides = [1, 1]} : vector<16x32xf32> to vector<16x1xf32>
    %245 = vector.broadcast %244 : vector<16x1xf32> to vector<16x4xf32>
    %246 = arith.mulf %245, %243 : vector<16x4xf32>
    %247 = arith.addf %242, %246 : vector<16x4xf32>
    %c0_54 = arith.constant 0 : index
    %c1376 = arith.constant 1376 : index
    %248 = vector.load %arg2[%c0_54, %c1376] : memref<16x1476xf32, #tpu.memory_space<vmem>>, vector<16x4xf32>
    %249 = vector.extract_strided_slice %206 {offsets = [0, 8], sizes = [16, 1], strides = [1, 1]} : vector<16x32xf32> to vector<16x1xf32>
    %250 = vector.broadcast %249 : vector<16x1xf32> to vector<16x4xf32>
    %251 = arith.mulf %250, %248 : vector<16x4xf32>
    %252 = arith.addf %247, %251 : vector<16x4xf32>
    %c0_55 = arith.constant 0 : index
    %c1380 = arith.constant 1380 : index
    %253 = vector.load %arg2[%c0_55, %c1380] : memref<16x1476xf32, #tpu.memory_space<vmem>>, vector<16x4xf32>
    %254 = vector.extract_strided_slice %206 {offsets = [0, 9], sizes = [16, 1], strides = [1, 1]} : vector<16x32xf32> to vector<16x1xf32>
    %255 = vector.broadcast %254 : vector<16x1xf32> to vector<16x4xf32>
    %256 = arith.mulf %255, %253 : vector<16x4xf32>
    %257 = arith.addf %252, %256 : vector<16x4xf32>
    %c0_56 = arith.constant 0 : index
    %c1384 = arith.constant 1384 : index
    %258 = vector.load %arg2[%c0_56, %c1384] : memref<16x1476xf32, #tpu.memory_space<vmem>>, vector<16x4xf32>
    %259 = vector.extract_strided_slice %206 {offsets = [0, 10], sizes = [16, 1], strides = [1, 1]} : vector<16x32xf32> to vector<16x1xf32>
    %260 = vector.broadcast %259 : vector<16x1xf32> to vector<16x4xf32>
    %261 = arith.mulf %260, %258 : vector<16x4xf32>
    %262 = arith.addf %257, %261 : vector<16x4xf32>
    %c0_57 = arith.constant 0 : index
    %c1388 = arith.constant 1388 : index
    %263 = vector.load %arg2[%c0_57, %c1388] : memref<16x1476xf32, #tpu.memory_space<vmem>>, vector<16x4xf32>
    %264 = vector.extract_strided_slice %206 {offsets = [0, 11], sizes = [16, 1], strides = [1, 1]} : vector<16x32xf32> to vector<16x1xf32>
    %265 = vector.broadcast %264 : vector<16x1xf32> to vector<16x4xf32>
    %266 = arith.mulf %265, %263 : vector<16x4xf32>
    %267 = arith.addf %262, %266 : vector<16x4xf32>
    %c0_58 = arith.constant 0 : index
    %c1392 = arith.constant 1392 : index
    %268 = vector.load %arg2[%c0_58, %c1392] : memref<16x1476xf32, #tpu.memory_space<vmem>>, vector<16x4xf32>
    %269 = vector.extract_strided_slice %206 {offsets = [0, 12], sizes = [16, 1], strides = [1, 1]} : vector<16x32xf32> to vector<16x1xf32>
    %270 = vector.broadcast %269 : vector<16x1xf32> to vector<16x4xf32>
    %271 = arith.mulf %270, %268 : vector<16x4xf32>
    %272 = arith.addf %267, %271 : vector<16x4xf32>
    %c0_59 = arith.constant 0 : index
    %c1396 = arith.constant 1396 : index
    %273 = vector.load %arg2[%c0_59, %c1396] : memref<16x1476xf32, #tpu.memory_space<vmem>>, vector<16x4xf32>
    %274 = vector.extract_strided_slice %206 {offsets = [0, 13], sizes = [16, 1], strides = [1, 1]} : vector<16x32xf32> to vector<16x1xf32>
    %275 = vector.broadcast %274 : vector<16x1xf32> to vector<16x4xf32>
    %276 = arith.mulf %275, %273 : vector<16x4xf32>
    %277 = arith.addf %272, %276 : vector<16x4xf32>
    %c0_60 = arith.constant 0 : index
    %c1400 = arith.constant 1400 : index
    %278 = vector.load %arg2[%c0_60, %c1400] : memref<16x1476xf32, #tpu.memory_space<vmem>>, vector<16x4xf32>
    %279 = vector.extract_strided_slice %206 {offsets = [0, 14], sizes = [16, 1], strides = [1, 1]} : vector<16x32xf32> to vector<16x1xf32>
    %280 = vector.broadcast %279 : vector<16x1xf32> to vector<16x4xf32>
    %281 = arith.mulf %280, %278 : vector<16x4xf32>
    %282 = arith.addf %277, %281 : vector<16x4xf32>
    %c0_61 = arith.constant 0 : index
    %c1404 = arith.constant 1404 : index
    %283 = vector.load %arg2[%c0_61, %c1404] : memref<16x1476xf32, #tpu.memory_space<vmem>>, vector<16x4xf32>
    %284 = vector.extract_strided_slice %206 {offsets = [0, 15], sizes = [16, 1], strides = [1, 1]} : vector<16x32xf32> to vector<16x1xf32>
    %285 = vector.broadcast %284 : vector<16x1xf32> to vector<16x4xf32>
    %286 = arith.mulf %285, %283 : vector<16x4xf32>
    %287 = arith.addf %282, %286 : vector<16x4xf32>
    %c0_62 = arith.constant 0 : index
    %c1408 = arith.constant 1408 : index
    %288 = vector.load %arg2[%c0_62, %c1408] : memref<16x1476xf32, #tpu.memory_space<vmem>>, vector<16x4xf32>
    %289 = vector.extract_strided_slice %206 {offsets = [0, 16], sizes = [16, 1], strides = [1, 1]} : vector<16x32xf32> to vector<16x1xf32>
    %290 = vector.broadcast %289 : vector<16x1xf32> to vector<16x4xf32>
    %291 = arith.mulf %290, %288 : vector<16x4xf32>
    %292 = arith.addf %287, %291 : vector<16x4xf32>
    %c0_63 = arith.constant 0 : index
    %c1412 = arith.constant 1412 : index
    %293 = vector.load %arg2[%c0_63, %c1412] : memref<16x1476xf32, #tpu.memory_space<vmem>>, vector<16x4xf32>
    %294 = vector.extract_strided_slice %206 {offsets = [0, 17], sizes = [16, 1], strides = [1, 1]} : vector<16x32xf32> to vector<16x1xf32>
    %295 = vector.broadcast %294 : vector<16x1xf32> to vector<16x4xf32>
    %296 = arith.mulf %295, %293 : vector<16x4xf32>
    %297 = arith.addf %292, %296 : vector<16x4xf32>
    %c0_64 = arith.constant 0 : index
    %c1416 = arith.constant 1416 : index
    %298 = vector.load %arg2[%c0_64, %c1416] : memref<16x1476xf32, #tpu.memory_space<vmem>>, vector<16x4xf32>
    %299 = vector.extract_strided_slice %206 {offsets = [0, 18], sizes = [16, 1], strides = [1, 1]} : vector<16x32xf32> to vector<16x1xf32>
    %300 = vector.broadcast %299 : vector<16x1xf32> to vector<16x4xf32>
    %301 = arith.mulf %300, %298 : vector<16x4xf32>
    %302 = arith.addf %297, %301 : vector<16x4xf32>
    %c0_65 = arith.constant 0 : index
    %c1420 = arith.constant 1420 : index
    %303 = vector.load %arg2[%c0_65, %c1420] : memref<16x1476xf32, #tpu.memory_space<vmem>>, vector<16x4xf32>
    %304 = vector.extract_strided_slice %206 {offsets = [0, 19], sizes = [16, 1], strides = [1, 1]} : vector<16x32xf32> to vector<16x1xf32>
    %305 = vector.broadcast %304 : vector<16x1xf32> to vector<16x4xf32>
    %306 = arith.mulf %305, %303 : vector<16x4xf32>
    %307 = arith.addf %302, %306 : vector<16x4xf32>
    %c0_66 = arith.constant 0 : index
    %c1424 = arith.constant 1424 : index
    %308 = vector.load %arg2[%c0_66, %c1424] : memref<16x1476xf32, #tpu.memory_space<vmem>>, vector<16x4xf32>
    %309 = vector.extract_strided_slice %206 {offsets = [0, 20], sizes = [16, 1], strides = [1, 1]} : vector<16x32xf32> to vector<16x1xf32>
    %310 = vector.broadcast %309 : vector<16x1xf32> to vector<16x4xf32>
    %311 = arith.mulf %310, %308 : vector<16x4xf32>
    %312 = arith.addf %307, %311 : vector<16x4xf32>
    %c0_67 = arith.constant 0 : index
    %c1428 = arith.constant 1428 : index
    %313 = vector.load %arg2[%c0_67, %c1428] : memref<16x1476xf32, #tpu.memory_space<vmem>>, vector<16x4xf32>
    %314 = vector.extract_strided_slice %206 {offsets = [0, 21], sizes = [16, 1], strides = [1, 1]} : vector<16x32xf32> to vector<16x1xf32>
    %315 = vector.broadcast %314 : vector<16x1xf32> to vector<16x4xf32>
    %316 = arith.mulf %315, %313 : vector<16x4xf32>
    %317 = arith.addf %312, %316 : vector<16x4xf32>
    %c0_68 = arith.constant 0 : index
    %c1432 = arith.constant 1432 : index
    %318 = vector.load %arg2[%c0_68, %c1432] : memref<16x1476xf32, #tpu.memory_space<vmem>>, vector<16x4xf32>
    %319 = vector.extract_strided_slice %206 {offsets = [0, 22], sizes = [16, 1], strides = [1, 1]} : vector<16x32xf32> to vector<16x1xf32>
    %320 = vector.broadcast %319 : vector<16x1xf32> to vector<16x4xf32>
    %321 = arith.mulf %320, %318 : vector<16x4xf32>
    %322 = arith.addf %317, %321 : vector<16x4xf32>
    %c0_69 = arith.constant 0 : index
    %c1436 = arith.constant 1436 : index
    %323 = vector.load %arg2[%c0_69, %c1436] : memref<16x1476xf32, #tpu.memory_space<vmem>>, vector<16x4xf32>
    %324 = vector.extract_strided_slice %206 {offsets = [0, 23], sizes = [16, 1], strides = [1, 1]} : vector<16x32xf32> to vector<16x1xf32>
    %325 = vector.broadcast %324 : vector<16x1xf32> to vector<16x4xf32>
    %326 = arith.mulf %325, %323 : vector<16x4xf32>
    %327 = arith.addf %322, %326 : vector<16x4xf32>
    %c0_70 = arith.constant 0 : index
    %c1440 = arith.constant 1440 : index
    %328 = vector.load %arg2[%c0_70, %c1440] : memref<16x1476xf32, #tpu.memory_space<vmem>>, vector<16x4xf32>
    %329 = vector.extract_strided_slice %206 {offsets = [0, 24], sizes = [16, 1], strides = [1, 1]} : vector<16x32xf32> to vector<16x1xf32>
    %330 = vector.broadcast %329 : vector<16x1xf32> to vector<16x4xf32>
    %331 = arith.mulf %330, %328 : vector<16x4xf32>
    %332 = arith.addf %327, %331 : vector<16x4xf32>
    %c0_71 = arith.constant 0 : index
    %c1444 = arith.constant 1444 : index
    %333 = vector.load %arg2[%c0_71, %c1444] : memref<16x1476xf32, #tpu.memory_space<vmem>>, vector<16x4xf32>
    %334 = vector.extract_strided_slice %206 {offsets = [0, 25], sizes = [16, 1], strides = [1, 1]} : vector<16x32xf32> to vector<16x1xf32>
    %335 = vector.broadcast %334 : vector<16x1xf32> to vector<16x4xf32>
    %336 = arith.mulf %335, %333 : vector<16x4xf32>
    %337 = arith.addf %332, %336 : vector<16x4xf32>
    %c0_72 = arith.constant 0 : index
    %c1448 = arith.constant 1448 : index
    %338 = vector.load %arg2[%c0_72, %c1448] : memref<16x1476xf32, #tpu.memory_space<vmem>>, vector<16x4xf32>
    %339 = vector.extract_strided_slice %206 {offsets = [0, 26], sizes = [16, 1], strides = [1, 1]} : vector<16x32xf32> to vector<16x1xf32>
    %340 = vector.broadcast %339 : vector<16x1xf32> to vector<16x4xf32>
    %341 = arith.mulf %340, %338 : vector<16x4xf32>
    %342 = arith.addf %337, %341 : vector<16x4xf32>
    %c0_73 = arith.constant 0 : index
    %c1452 = arith.constant 1452 : index
    %343 = vector.load %arg2[%c0_73, %c1452] : memref<16x1476xf32, #tpu.memory_space<vmem>>, vector<16x4xf32>
    %344 = vector.extract_strided_slice %206 {offsets = [0, 27], sizes = [16, 1], strides = [1, 1]} : vector<16x32xf32> to vector<16x1xf32>
    %345 = vector.broadcast %344 : vector<16x1xf32> to vector<16x4xf32>
    %346 = arith.mulf %345, %343 : vector<16x4xf32>
    %347 = arith.addf %342, %346 : vector<16x4xf32>
    %c0_74 = arith.constant 0 : index
    %c1456 = arith.constant 1456 : index
    %348 = vector.load %arg2[%c0_74, %c1456] : memref<16x1476xf32, #tpu.memory_space<vmem>>, vector<16x4xf32>
    %349 = vector.extract_strided_slice %206 {offsets = [0, 28], sizes = [16, 1], strides = [1, 1]} : vector<16x32xf32> to vector<16x1xf32>
    %350 = vector.broadcast %349 : vector<16x1xf32> to vector<16x4xf32>
    %351 = arith.mulf %350, %348 : vector<16x4xf32>
    %352 = arith.addf %347, %351 : vector<16x4xf32>
    %c0_75 = arith.constant 0 : index
    %c1460 = arith.constant 1460 : index
    %353 = vector.load %arg2[%c0_75, %c1460] : memref<16x1476xf32, #tpu.memory_space<vmem>>, vector<16x4xf32>
    %354 = vector.extract_strided_slice %206 {offsets = [0, 29], sizes = [16, 1], strides = [1, 1]} : vector<16x32xf32> to vector<16x1xf32>
    %355 = vector.broadcast %354 : vector<16x1xf32> to vector<16x4xf32>
    %356 = arith.mulf %355, %353 : vector<16x4xf32>
    %357 = arith.addf %352, %356 : vector<16x4xf32>
    %c0_76 = arith.constant 0 : index
    %c1464 = arith.constant 1464 : index
    %358 = vector.load %arg2[%c0_76, %c1464] : memref<16x1476xf32, #tpu.memory_space<vmem>>, vector<16x4xf32>
    %359 = vector.extract_strided_slice %206 {offsets = [0, 30], sizes = [16, 1], strides = [1, 1]} : vector<16x32xf32> to vector<16x1xf32>
    %360 = vector.broadcast %359 : vector<16x1xf32> to vector<16x4xf32>
    %361 = arith.mulf %360, %358 : vector<16x4xf32>
    %362 = arith.addf %357, %361 : vector<16x4xf32>
    %c0_77 = arith.constant 0 : index
    %c1468 = arith.constant 1468 : index
    %363 = vector.load %arg2[%c0_77, %c1468] : memref<16x1476xf32, #tpu.memory_space<vmem>>, vector<16x4xf32>
    %364 = vector.extract_strided_slice %206 {offsets = [0, 31], sizes = [16, 1], strides = [1, 1]} : vector<16x32xf32> to vector<16x1xf32>
    %365 = vector.broadcast %364 : vector<16x1xf32> to vector<16x4xf32>
    %366 = arith.mulf %365, %363 : vector<16x4xf32>
    %367 = arith.addf %362, %366 : vector<16x4xf32>
    %c0_78 = arith.constant 0 : index
    %c0_79 = arith.constant 0 : index
    %368 = vector.load %arg3[%c0_78, %c0_79] : memref<16x4xf32, #tpu.memory_space<vmem>>, vector<16x4xf32>
    tpu.vector_store %arg3[%c0_78, %c0_79], %367 {strides = array<i32>} : memref<16x4xf32, #tpu.memory_space<vmem>>, vector<16x4xf32>,
    return
  }
  func.func @transform_0(%arg0: i32) -> (i32, i32) {
    %c0_i32 = arith.constant 0 : i32
    %c0_i32_0 = arith.constant 0 : i32
    return %arg0, %c0_i32 : i32, i32
  }
  func.func @transform_1(%arg0: i32) -> (i32, i32) {
    %c0_i32 = arith.constant 0 : i32
    %c0_i32_0 = arith.constant 0 : i32
    return %arg0, %c0_i32 : i32, i32
  }
  func.func @transform_2(%arg0: i32) -> (i32, i32) {
    %c0_i32 = arith.constant 0 : i32
    %c0_i32_0 = arith.constant 0 : i32
    return %arg0, %c0_i32 : i32, i32
  }
}

</mosaic_0001>

<llo_original>
// kernel: tpu_custom_call.1
$region0: #{tpu_custom_call.1}
  #allocation0 [shape = 'u32[]', space=smem, size = 0x4, offset = 0x4, fixed_abs, tag = 'smem constant byte address 0x4 - core index']
  #allocation1 [shape = 'u32[144,128]{1,0:T(1,128)}', space=vmem, size = 0x12000, scoped, tag = 'internal scratch']
  %s0 = inlined_call_operand.vmem [shape: f32[16,8], index: 0, kind: input, shape index: {}]
  %s1 = inlined_call_operand.hbm [shape: f32[16,1476], index: 1, kind: input, shape index: {}]
  %s2 = inlined_call_operand.vmem [shape: f32[16,4], index: 2, kind: output, shape index: {}]
  %s3 = sld [smem:[#allocation0]]
  $region22: #{tpu_custom_call.1} parent=0
    _
  %s5 = ssub.s32 1, %s3
  %s6 = scalar_select 0, %s5, %s3
  $region1: #{tpu_custom_call.1} parent=0
    #allocation2 [shape = 'u8[98304]{0}', space=vmem, size = 0x18000, scoped, tag = 'input window, operand 1, single buffered']
    #allocation3 [shape = 's32[1]{0}', space=sflag, size = 0x4, scoped, tag = 'scoped memory for tpu_custom_call.1']
    %7 = vsyncpa [#allocation3], 0
    // Predicated region
    $region2: #{tpu_custom_call.1} parent=1 // pred_check
      _
    $region3: #{tpu_custom_call.1} parent=1 // pred_check_branch
      %9 = sbr.rel (0) target = $region5
    $region4: #{tpu_custom_call.1} parent=1 // pred_region
      _
    $region5: #{tpu_custom_call.1} parent=1 // pred_fallthru
      _
    // Predicated region
    $region6: #{tpu_custom_call.1} parent=1 // pred_check
      _
    $region7: #{tpu_custom_call.1} parent=1 // pred_check_branch
      %11 = sbr.rel (0) target = $region9
    $region8: #{tpu_custom_call.1} parent=1 // pred_region
      %s13 = ssub.s32 3072, 3072
      %14 = vsyncadd [#allocation3], %s13
      %s15 = sshll.u32 [#allocation2], 4
      %s16 = int_to_ptr.vmem [resolvable:$true] %s15
      %21 = dma.hbm_to_vmem [thread:$0]  %s1, 3072, %s16, [#allocation3], 1536, 1536, 96
    $region9: #{tpu_custom_call.1} parent=1 // pred_fallthru
      _
    // Predicated region
    $region10: #{tpu_custom_call.1} parent=1 // pred_check
      _
    $region11: #{tpu_custom_call.1} parent=1 // pred_check_branch
      %23 = sbr.rel (0) target = $region13
    $region12: #{tpu_custom_call.1} parent=1 // pred_region
      %24 = dma.done [#allocation3], 3072
    $region13: #{tpu_custom_call.1} parent=1 // pred_fallthru
      _
    %v25 = vld [vmem:[%s0] sm:$0xff]
    %v26 = vld [vmem:[%s0 + $0x8] sm:$0xff]
    %v27 = vld [vmem:[#allocation2 + $0x10] sm:$0xff]
    %v28 = vld [vmem:[#allocation2 + $0x70] sm:$0xff]
    %v29 = vld [vmem:[#allocation2] sm:$0xff]
    %v30 = vld [vmem:[#allocation2 + $0x60] sm:$0xff]
    %32 = vset.pattern.permute.xlu0 0
    %33 = vperm.xlu0 %32, %v25
    %v34 = vpop.permute.xlu0 %33
    %37 = vset.pattern.permute.xlu0 0
    %38 = vperm.xlu0 %37, %v26
    %v39 = vpop.permute.xlu0 %38
    %v41 = vmul.f32 %v34, %v29
    %v42 = vmul.f32 %v39, %v30
    %v43 = vadd.f32 %v27, %v41
    %v44 = vadd.f32 %v28, %v42
    %45 = vset.pattern.permute.xlu0 1
    %46 = vperm.xlu0 %45, %v25
    %v47 = vpop.permute.xlu0 %46
    %49 = vset.pattern.permute.xlu0 1
    %50 = vperm.xlu0 %49, %v26
    %v51 = vpop.permute.xlu0 %50
    %v53 = vmul.f32 %v47, %v29
    %v54 = vmul.f32 %v51, %v30
    %57 = vrot.lane.b32.xlu0 %v53, 96
    %v58 = vpop.permute.xlu0 %57
    %59 = vrot.lane.b32.xlu0 %v54, 96
    %v60 = vpop.permute.xlu0 %59
    %v63 = vadd.f32 %v43, %v58
    %v64 = vadd.f32 %v44, %v60
    %65 = vset.pattern.permute.xlu0 2
    %66 = vperm.xlu0 %65, %v25
    %v67 = vpop.permute.xlu0 %66
    %69 = vset.pattern.permute.xlu0 2
    %70 = vperm.xlu0 %69, %v26
    %v71 = vpop.permute.xlu0 %70
    %v73 = vmul.f32 %v67, %v29
    %v74 = vmul.f32 %v71, %v30
    %77 = vrot.lane.b32.xlu0 %v73, 64
    %v78 = vpop.permute.xlu0 %77
    %79 = vrot.lane.b32.xlu0 %v74, 64
    %v80 = vpop.permute.xlu0 %79
    %v83 = vadd.f32 %v63, %v78
    %v84 = vadd.f32 %v64, %v80
    %85 = vset.pattern.permute.xlu0 3
    %86 = vperm.xlu0 %85, %v25
    %v87 = vpop.permute.xlu0 %86
    %89 = vset.pattern.permute.xlu0 3
    %90 = vperm.xlu0 %89, %v26
    %v91 = vpop.permute.xlu0 %90
    %v93 = vmul.f32 %v87, %v29
    %v94 = vmul.f32 %v91, %v30
    %97 = vrot.lane.b32.xlu0 %v93, 32
    %v98 = vpop.permute.xlu0 %97
    %99 = vrot.lane.b32.xlu0 %v94, 32
    %v100 = vpop.permute.xlu0 %99
    %v103 = vadd.f32 %v83, %v98
    %v104 = vadd.f32 %v84, %v100
    %v105 = vld [vmem:[#allocation2 + $0x8] sm:$0xff]
    %v106 = vld [vmem:[#allocation2 + $0x68] sm:$0xff]
    %107 = vset.pattern.permute.xlu0 4
    %108 = vperm.xlu0 %107, %v25
    %v109 = vpop.permute.xlu0 %108
    %111 = vset.pattern.permute.xlu0 4
    %112 = vperm.xlu0 %111, %v26
    %v113 = vpop.permute.xlu0 %112
    %v115 = vmul.f32 %v109, %v105
    %v116 = vmul.f32 %v113, %v106
    %v117 = vadd.f32 %v103, %v115
    %v118 = vadd.f32 %v104, %v116
    %119 = vset.pattern.permute.xlu0 5
    %120 = vperm.xlu0 %119, %v25
    %v121 = vpop.permute.xlu0 %120
    %123 = vset.pattern.permute.xlu0 5
    %124 = vperm.xlu0 %123, %v26
    %v125 = vpop.permute.xlu0 %124
    %v127 = vmul.f32 %v121, %v105
    %v128 = vmul.f32 %v125, %v106
    %131 = vrot.lane.b32.xlu0 %v127, 96
    %v132 = vpop.permute.xlu0 %131
    %133 = vrot.lane.b32.xlu0 %v128, 96
    %v134 = vpop.permute.xlu0 %133
    %v137 = vadd.f32 %v117, %v132
    %v138 = vadd.f32 %v118, %v134
    %139 = vset.pattern.permute.xlu0 6
    %140 = vperm.xlu0 %139, %v25
    %v141 = vpop.permute.xlu0 %140
    %143 = vset.pattern.permute.xlu0 6
    %144 = vperm.xlu0 %143, %v26
    %v145 = vpop.permute.xlu0 %144
    %v147 = vmul.f32 %v141, %v105
    %v148 = vmul.f32 %v145, %v106
    %151 = vrot.lane.b32.xlu0 %v147, 64
    %v152 = vpop.permute.xlu0 %151
    %153 = vrot.lane.b32.xlu0 %v148, 64
    %v154 = vpop.permute.xlu0 %153
    %v157 = vadd.f32 %v137, %v152
    %v158 = vadd.f32 %v138, %v154
    %159 = vset.pattern.permute.xlu0 7
    %160 = vperm.xlu0 %159, %v25
    %v161 = vpop.permute.xlu0 %160
    %163 = vset.pattern.permute.xlu0 7
    %164 = vperm.xlu0 %163, %v26
    %v165 = vpop.permute.xlu0 %164
    %v167 = vmul.f32 %v161, %v105
    %v168 = vmul.f32 %v165, %v106
    %171 = vrot.lane.b32.xlu0 %v167, 32
    %v172 = vpop.permute.xlu0 %171
    %173 = vrot.lane.b32.xlu0 %v168, 32
    %v174 = vpop.permute.xlu0 %173
    %v177 = vadd.f32 %v157, %v172
    %v178 = vadd.f32 %v158, %v174
    %v179 = vmax.f32 %v177, 0.0
    %v180 = vmax.f32 %v178, 0.0
    %v181 = vld [vmem:[#allocation2 + $0x50] sm:$0xff]
    %v182 = vld [vmem:[#allocation2 + $0xb0] sm:$0xff]
    %184 = vset.pattern.permute.xlu0 0
    %185 = vperm.xlu0 %184, %v179
    %v186 = vpop.permute.xlu0 %185
    %189 = vset.pattern.permute.xlu0 0
    %190 = vperm.xlu0 %189, %v180
    %v191 = vpop.permute.xlu0 %190
    %v193 = vmul.f32 %v186, %v27
    %v194 = vmul.f32 %v191, %v28
    %v195 = vadd.f32 %v181, %v193
    %v196 = vadd.f32 %v182, %v194
    %197 = vset.pattern.permute.xlu0 1
    %198 = vperm.xlu0 %197, %v179
    %v199 = vpop.permute.xlu0 %198
    %201 = vset.pattern.permute.xlu0 1
    %202 = vperm.xlu0 %201, %v180
    %v203 = vpop.permute.xlu0 %202
    %v205 = vmul.f32 %v199, %v27
    %v206 = vmul.f32 %v203, %v28
    %209 = vrot.lane.b32.xlu0 %v205, 96
    %v210 = vpop.permute.xlu0 %209
    %211 = vrot.lane.b32.xlu0 %v206, 96
    %v212 = vpop.permute.xlu0 %211
    %v215 = vadd.f32 %v195, %v210
    %v216 = vadd.f32 %v196, %v212
    %217 = vset.pattern.permute.xlu0 2
    %218 = vperm.xlu0 %217, %v179
    %v219 = vpop.permute.xlu0 %218
    %221 = vset.pattern.permute.xlu0 2
    %222 = vperm.xlu0 %221, %v180
    %v223 = vpop.permute.xlu0 %222
    %v225 = vmul.f32 %v219, %v27
    %v226 = vmul.f32 %v223, %v28
    %229 = vrot.lane.b32.xlu0 %v225, 64
    %v230 = vpop.permute.xlu0 %229
    %231 = vrot.lane.b32.xlu0 %v226, 64
    %v232 = vpop.permute.xlu0 %231
    %v235 = vadd.f32 %v215, %v230
    %v236 = vadd.f32 %v216, %v232
    %v237 = vld [vmem:[#allocation2 + $0x18] sm:$0xff]
    %v238 = vld [vmem:[#allocation2 + $0x78] sm:$0xff]
    %239 = vset.pattern.permute.xlu0 3
    %240 = vperm.xlu0 %239, %v179
    %v241 = vpop.permute.xlu0 %240
    %243 = vset.pattern.permute.xlu0 3
    %244 = vperm.xlu0 %243, %v180
    %v245 = vpop.permute.xlu0 %244
    %v247 = vmul.f32 %v241, %v237
    %v248 = vmul.f32 %v245, %v238
    %251 = vrot.lane.b32.xlu0 %v247, 32
    %v252 = vpop.permute.xlu0 %251
    %253 = vrot.lane.b32.xlu0 %v248, 32
    %v254 = vpop.permute.xlu0 %253
    %v257 = vadd.f32 %v235, %v252
    %v258 = vadd.f32 %v236, %v254
    %259 = vset.pattern.permute.xlu0 4
    %260 = vperm.xlu0 %259, %v179
    %v261 = vpop.permute.xlu0 %260
    %263 = vset.pattern.permute.xlu0 4
    %264 = vperm.xlu0 %263, %v180
    %v265 = vpop.permute.xlu0 %264
    %v267 = vmul.f32 %v261, %v237
    %v268 = vmul.f32 %v265, %v238
    %v269 = vadd.f32 %v257, %v267
    %v270 = vadd.f32 %v258, %v268
    %271 = vset.pattern.permute.xlu0 5
    %272 = vperm.xlu0 %271, %v179
    %v273 = vpop.permute.xlu0 %272
    %275 = vset.pattern.permute.xlu0 5
    %276 = vperm.xlu0 %275, %v180
    %v277 = vpop.permute.xlu0 %276
    %v279 = vmul.f32 %v273, %v237
    %v280 = vmul.f32 %v277, %v238
    %283 = vrot.lane.b32.xlu0 %v279, 96
    %v284 = vpop.permute.xlu0 %283
    %285 = vrot.lane.b32.xlu0 %v280, 96
    %v286 = vpop.permute.xlu0 %285
    %v289 = vadd.f32 %v269, %v284
    %v290 = vadd.f32 %v270, %v286
    %291 = vset.pattern.permute.xlu0 6
    %292 = vperm.xlu0 %291, %v179
    %v293 = vpop.permute.xlu0 %292
    %295 = vset.pattern.permute.xlu0 6
    %296 = vperm.xlu0 %295, %v180
    %v297 = vpop.permute.xlu0 %296
    %v299 = vmul.f32 %v293, %v237
    %v300 = vmul.f32 %v297, %v238
    %303 = vrot.lane.b32.xlu0 %v299, 64
    %v304 = vpop.permute.xlu0 %303
    %305 = vrot.lane.b32.xlu0 %v300, 64
    %v306 = vpop.permute.xlu0 %305
    %v309 = vadd.f32 %v289, %v304
    %v310 = vadd.f32 %v290, %v306
    %v311 = vld [vmem:[#allocation2 + $0x20] sm:$0xff]
    %v312 = vld [vmem:[#allocation2 + $0x80] sm:$0xff]
    %313 = vset.pattern.permute.xlu0 7
    %314 = vperm.xlu0 %313, %v179
    %v315 = vpop.permute.xlu0 %314
    %317 = vset.pattern.permute.xlu0 7
    %318 = vperm.xlu0 %317, %v180
    %v319 = vpop.permute.xlu0 %318
    %v321 = vmul.f32 %v315, %v311
    %v322 = vmul.f32 %v319, %v312
    %325 = vrot.lane.b32.xlu0 %v321, 32
    %v326 = vpop.permute.xlu0 %325
    %327 = vrot.lane.b32.xlu0 %v322, 32
    %v328 = vpop.permute.xlu0 %327
    %v331 = vadd.f32 %v309, %v326
    %v332 = vadd.f32 %v310, %v328
    %333 = vset.pattern.permute.xlu0 8
    %334 = vperm.xlu0 %333, %v179
    %v335 = vpop.permute.xlu0 %334
    %337 = vset.pattern.permute.xlu0 8
    %338 = vperm.xlu0 %337, %v180
    %v339 = vpop.permute.xlu0 %338
    %v341 = vmul.f32 %v335, %v311
    %v342 = vmul.f32 %v339, %v312
    %v343 = vadd.f32 %v331, %v341
    %v344 = vadd.f32 %v332, %v342
    %345 = vset.pattern.permute.xlu0 9
    %346 = vperm.xlu0 %345, %v179
    %v347 = vpop.permute.xlu0 %346
    %349 = vset.pattern.permute.xlu0 9
    %350 = vperm.xlu0 %349, %v180
    %v351 = vpop.permute.xlu0 %350
    %v353 = vmul.f32 %v347, %v311
    %v354 = vmul.f32 %v351, %v312
    %357 = vrot.lane.b32.xlu0 %v353, 96
    %v358 = vpop.permute.xlu0 %357
    %359 = vrot.lane.b32.xlu0 %v354, 96
    %v360 = vpop.permute.xlu0 %359
    %v363 = vadd.f32 %v343, %v358
    %v364 = vadd.f32 %v344, %v360
    %365 = vset.pattern.permute.xlu0 10
    %366 = vperm.xlu0 %365, %v179
    %v367 = vpop.permute.xlu0 %366
    %369 = vset.pattern.permute.xlu0 10
    %370 = vperm.xlu0 %369, %v180
    %v371 = vpop.permute.xlu0 %370
    %v373 = vmul.f32 %v367, %v311
    %v374 = vmul.f32 %v371, %v312
    %377 = vrot.lane.b32.xlu0 %v373, 64
    %v378 = vpop.permute.xlu0 %377
    %379 = vrot.lane.b32.xlu0 %v374, 64
    %v380 = vpop.permute.xlu0 %379
    %v383 = vadd.f32 %v363, %v378
    %v384 = vadd.f32 %v364, %v380
    %v385 = vld [vmem:[#allocation2 + $0x28] sm:$0xff]
    %v386 = vld [vmem:[#allocation2 + $0x88] sm:$0xff]
    %387 = vset.pattern.permute.xlu0 11
    %388 = vperm.xlu0 %387, %v179
    %v389 = vpop.permute.xlu0 %388
    %391 = vset.pattern.permute.xlu0 11
    %392 = vperm.xlu0 %391, %v180
    %v393 = vpop.permute.xlu0 %392
    %v395 = vmul.f32 %v389, %v385
    %v396 = vmul.f32 %v393, %v386
    %399 = vrot.lane.b32.xlu0 %v395, 32
    %v400 = vpop.permute.xlu0 %399
    %401 = vrot.lane.b32.xlu0 %v396, 32
    %v402 = vpop.permute.xlu0 %401
    %v405 = vadd.f32 %v383, %v400
    %v406 = vadd.f32 %v384, %v402
    %407 = vset.pattern.permute.xlu0 12
    %408 = vperm.xlu0 %407, %v179
    %v409 = vpop.permute.xlu0 %408
    %411 = vset.pattern.permute.xlu0 12
    %412 = vperm.xlu0 %411, %v180
    %v413 = vpop.permute.xlu0 %412
    %v415 = vmul.f32 %v409, %v385
    %v416 = vmul.f32 %v413, %v386
    %v417 = vadd.f32 %v405, %v415
    %v418 = vadd.f32 %v406, %v416
    %419 = vset.pattern.permute.xlu0 13
    %420 = vperm.xlu0 %419, %v179
    %v421 = vpop.permute.xlu0 %420
    %423 = vset.pattern.permute.xlu0 13
    %424 = vperm.xlu0 %423, %v180
    %v425 = vpop.permute.xlu0 %424
    %v427 = vmul.f32 %v421, %v385
    %v428 = vmul.f32 %v425, %v386
    %431 = vrot.lane.b32.xlu0 %v427, 96
    %v432 = vpop.permute.xlu0 %431
    %433 = vrot.lane.b32.xlu0 %v428, 96
    %v434 = vpop.permute.xlu0 %433
    %v437 = vadd.f32 %v417, %v432
    %v438 = vadd.f32 %v418, %v434
    %439 = vset.pattern.permute.xlu0 14
    %440 = vperm.xlu0 %439, %v179
    %v441 = vpop.permute.xlu0 %440
    %443 = vset.pattern.permute.xlu0 14
    %444 = vperm.xlu0 %443, %v180
    %v445 = vpop.permute.xlu0 %444
    %v447 = vmul.f32 %v441, %v385
    %v448 = vmul.f32 %v445, %v386
    %451 = vrot.lane.b32.xlu0 %v447, 64
    %v452 = vpop.permute.xlu0 %451
    %453 = vrot.lane.b32.xlu0 %v448, 64
    %v454 = vpop.permute.xlu0 %453
    %v457 = vadd.f32 %v437, %v452
    %v458 = vadd.f32 %v438, %v454
    %v459 = vld [vmem:[#allocation2 + $0x30] sm:$0xff]
    %v460 = vld [vmem:[#allocation2 + $0x90] sm:$0xff]
    %461 = vset.pattern.permute.xlu0 15
    %462 = vperm.xlu0 %461, %v179
    %v463 = vpop.permute.xlu0 %462
    %465 = vset.pattern.permute.xlu0 15
    %466 = vperm.xlu0 %465, %v180
    %v467 = vpop.permute.xlu0 %466
    %v469 = vmul.f32 %v463, %v459
    %v470 = vmul.f32 %v467, %v460
    %473 = vrot.lane.b32.xlu0 %v469, 32
    %v474 = vpop.permute.xlu0 %473
    %475 = vrot.lane.b32.xlu0 %v470, 32
    %v476 = vpop.permute.xlu0 %475
    %v479 = vadd.f32 %v457, %v474
    %v480 = vadd.f32 %v458, %v476
    %481 = vset.pattern.permute.xlu0 16
    %482 = vperm.xlu0 %481, %v179
    %v483 = vpop.permute.xlu0 %482
    %485 = vset.pattern.permute.xlu0 16
    %486 = vperm.xlu0 %485, %v180
    %v487 = vpop.permute.xlu0 %486
    %v489 = vmul.f32 %v483, %v459
    %v490 = vmul.f32 %v487, %v460
    %v491 = vadd.f32 %v479, %v489
    %v492 = vadd.f32 %v480, %v490
    %493 = vset.pattern.permute.xlu0 17
    %494 = vperm.xlu0 %493, %v179
    %v495 = vpop.permute.xlu0 %494
    %497 = vset.pattern.permute.xlu0 17
    %498 = vperm.xlu0 %497, %v180
    %v499 = vpop.permute.xlu0 %498
    %v501 = vmul.f32 %v495, %v459
    %v502 = vmul.f32 %v499, %v460
    %505 = vrot.lane.b32.xlu0 %v501, 96
    %v506 = vpop.permute.xlu0 %505
    %507 = vrot.lane.b32.xlu0 %v502, 96
    %v508 = vpop.permute.xlu0 %507
    %v511 = vadd.f32 %v491, %v506
    %v512 = vadd.f32 %v492, %v508
    %513 = vset.pattern.permute.xlu0 18
    %514 = vperm.xlu0 %513, %v179
    %v515 = vpop.permute.xlu0 %514
    %517 = vset.pattern.permute.xlu0 18
    %518 = vperm.xlu0 %517, %v180
    %v519 = vpop.permute.xlu0 %518
    %v521 = vmul.f32 %v515, %v459
    %v522 = vmul.f32 %v519, %v460
    %525 = vrot.lane.b32.xlu0 %v521, 64
    %v526 = vpop.permute.xlu0 %525
    %527 = vrot.lane.b32.xlu0 %v522, 64
    %v528 = vpop.permute.xlu0 %527
    %v531 = vadd.f32 %v511, %v526
    %v532 = vadd.f32 %v512, %v528
    %v533 = vld [vmem:[#allocation2 + $0x38] sm:$0xff]
    %v534 = vld [vmem:[#allocation2 + $0x98] sm:$0xff]
    %535 = vset.pattern.permute.xlu0 19
    %536 = vperm.xlu0 %535, %v179
    %v537 = vpop.permute.xlu0 %536
    %539 = vset.pattern.permute.xlu0 19
    %540 = vperm.xlu0 %539, %v180
    %v541 = vpop.permute.xlu0 %540
    %v543 = vmul.f32 %v537, %v533
    %v544 = vmul.f32 %v541, %v534
    %547 = vrot.lane.b32.xlu0 %v543, 32
    %v548 = vpop.permute.xlu0 %547
    %549 = vrot.lane.b32.xlu0 %v544, 32
    %v550 = vpop.permute.xlu0 %549
    %v553 = vadd.f32 %v531, %v548
    %v554 = vadd.f32 %v532, %v550
    %555 = vset.pattern.permute.xlu0 20
    %556 = vperm.xlu0 %555, %v179
    %v557 = vpop.permute.xlu0 %556
    %559 = vset.pattern.permute.xlu0 20
    %560 = vperm.xlu0 %559, %v180
    %v561 = vpop.permute.xlu0 %560
    %v563 = vmul.f32 %v557, %v533
    %v564 = vmul.f32 %v561, %v534
    %v565 = vadd.f32 %v553, %v563
    %v566 = vadd.f32 %v554, %v564
    %567 = vset.pattern.permute.xlu0 21
    %568 = vperm.xlu0 %567, %v179
    %v569 = vpop.permute.xlu0 %568
    %571 = vset.pattern.permute.xlu0 21
    %572 = vperm.xlu0 %571, %v180
    %v573 = vpop.permute.xlu0 %572
    %v575 = vmul.f32 %v569, %v533
    %v576 = vmul.f32 %v573, %v534
    %579 = vrot.lane.b32.xlu0 %v575, 96
    %v580 = vpop.permute.xlu0 %579
    %581 = vrot.lane.b32.xlu0 %v576, 96
    %v582 = vpop.permute.xlu0 %581
    %v585 = vadd.f32 %v565, %v580
    %v586 = vadd.f32 %v566, %v582
    %587 = vset.pattern.permute.xlu0 22
    %588 = vperm.xlu0 %587, %v179
    %v589 = vpop.permute.xlu0 %588
    %591 = vset.pattern.permute.xlu0 22
    %592 = vperm.xlu0 %591, %v180
    %v593 = vpop.permute.xlu0 %592
    %v595 = vmul.f32 %v589, %v533
    %v596 = vmul.f32 %v593, %v534
    %599 = vrot.lane.b32.xlu0 %v595, 64
    %v600 = vpop.permute.xlu0 %599
    %601 = vrot.lane.b32.xlu0 %v596, 64
    %v602 = vpop.permute.xlu0 %601
    %v605 = vadd.f32 %v585, %v600
    %v606 = vadd.f32 %v586, %v602
    %v607 = vld [vmem:[#allocation2 + $0x40] sm:$0xff]
    %v608 = vld [vmem:[#allocation2 + $0xa0] sm:$0xff]
    %609 = vset.pattern.permute.xlu0 23
    %610 = vperm.xlu0 %609, %v179
    %v611 = vpop.permute.xlu0 %610
    %613 = vset.pattern.permute.xlu0 23
    %614 = vperm.xlu0 %613, %v180
    %v615 = vpop.permute.xlu0 %614
    %v617 = vmul.f32 %v611, %v607
    %v618 = vmul.f32 %v615, %v608
    %621 = vrot.lane.b32.xlu0 %v617, 32
    %v622 = vpop.permute.xlu0 %621
    %623 = vrot.lane.b32.xlu0 %v618, 32
    %v624 = vpop.permute.xlu0 %623
    %v627 = vadd.f32 %v605, %v622
    %v628 = vadd.f32 %v606, %v624
    %629 = vset.pattern.permute.xlu0 24
    %630 = vperm.xlu0 %629, %v179
    %v631 = vpop.permute.xlu0 %630
    %633 = vset.pattern.permute.xlu0 24
    %634 = vperm.xlu0 %633, %v180
    %v635 = vpop.permute.xlu0 %634
    %v637 = vmul.f32 %v631, %v607
    %v638 = vmul.f32 %v635, %v608
    %v639 = vadd.f32 %v627, %v637
    %v640 = vadd.f32 %v628, %v638
    %641 = vset.pattern.permute.xlu0 25
    %642 = vperm.xlu0 %641, %v179
    %v643 = vpop.permute.xlu0 %642
    %645 = vset.pattern.permute.xlu0 25
    %646 = vperm.xlu0 %645, %v180
    %v647 = vpop.permute.xlu0 %646
    %v649 = vmul.f32 %v643, %v607
    %v650 = vmul.f32 %v647, %v608
    %653 = vrot.lane.b32.xlu0 %v649, 96
    %v654 = vpop.permute.xlu0 %653
    %655 = vrot.lane.b32.xlu0 %v650, 96
    %v656 = vpop.permute.xlu0 %655
    %v659 = vadd.f32 %v639, %v654
    %v660 = vadd.f32 %v640, %v656
    %661 = vset.pattern.permute.xlu0 26
    %662 = vperm.xlu0 %661, %v179
    %v663 = vpop.permute.xlu0 %662
    %665 = vset.pattern.permute.xlu0 26
    %666 = vperm.xlu0 %665, %v180
    %v667 = vpop.permute.xlu0 %666
    %v669 = vmul.f32 %v663, %v607
    %v670 = vmul.f32 %v667, %v608
    %673 = vrot.lane.b32.xlu0 %v669, 64
    %v674 = vpop.permute.xlu0 %673
    %675 = vrot.lane.b32.xlu0 %v670, 64
    %v676 = vpop.permute.xlu0 %675
    %v679 = vadd.f32 %v659, %v674
    %v680 = vadd.f32 %v660, %v676
    %v681 = vld [vmem:[#allocation2 + $0x48] sm:$0xff]
    %v682 = vld [vmem:[#allocation2 + $0xa8] sm:$0xff]
    %683 = vset.pattern.permute.xlu0 27
    %684 = vperm.xlu0 %683, %v179
    %v685 = vpop.permute.xlu0 %684
    %687 = vset.pattern.permute.xlu0 27
    %688 = vperm.xlu0 %687, %v180
    %v689 = vpop.permute.xlu0 %688
    %v691 = vmul.f32 %v685, %v681
    %v692 = vmul.f32 %v689, %v682
    %695 = vrot.lane.b32.xlu0 %v691, 32
    %v696 = vpop.permute.xlu0 %695
    %697 = vrot.lane.b32.xlu0 %v692, 32
    %v698 = vpop.permute.xlu0 %697
    %v701 = vadd.f32 %v679, %v696
    %v702 = vadd.f32 %v680, %v698
    %703 = vset.pattern.permute.xlu0 28
    %704 = vperm.xlu0 %703, %v179
    %v705 = vpop.permute.xlu0 %704
    %707 = vset.pattern.permute.xlu0 28
    %708 = vperm.xlu0 %707, %v180
    %v709 = vpop.permute.xlu0 %708
    %v711 = vmul.f32 %v705, %v681
    %v712 = vmul.f32 %v709, %v682
    %v713 = vadd.f32 %v701, %v711
    %v714 = vadd.f32 %v702, %v712
    %715 = vset.pattern.permute.xlu0 29
    %716 = vperm.xlu0 %715, %v179
    %v717 = vpop.permute.xlu0 %716
    %719 = vset.pattern.permute.xlu0 29
    %720 = vperm.xlu0 %719, %v180
    %v721 = vpop.permute.xlu0 %720
    %v723 = vmul.f32 %v717, %v681
    %v724 = vmul.f32 %v721, %v682
    %727 = vrot.lane.b32.xlu0 %v723, 96
    %v728 = vpop.permute.xlu0 %727
    %729 = vrot.lane.b32.xlu0 %v724, 96
    %v730 = vpop.permute.xlu0 %729
    %v733 = vadd.f32 %v713, %v728
    %v734 = vadd.f32 %v714, %v730
    %735 = vset.pattern.permute.xlu0 30
    %736 = vperm.xlu0 %735, %v179
    %v737 = vpop.permute.xlu0 %736
    %739 = vset.pattern.permute.xlu0 30
    %740 = vperm.xlu0 %739, %v180
    %v741 = vpop.permute.xlu0 %740
    %v743 = vmul.f32 %v737, %v681
    %v744 = vmul.f32 %v741, %v682
    %747 = vrot.lane.b32.xlu0 %v743, 64
    %v748 = vpop.permute.xlu0 %747
    %749 = vrot.lane.b32.xlu0 %v744, 64
    %v750 = vpop.permute.xlu0 %749
    %v753 = vadd.f32 %v733, %v748
    %v754 = vadd.f32 %v734, %v750
    %755 = vset.pattern.permute.xlu0 31
    %756 = vperm.xlu0 %755, %v179
    %v757 = vpop.permute.xlu0 %756
    %759 = vset.pattern.permute.xlu0 31
    %760 = vperm.xlu0 %759, %v180
    %v761 = vpop.permute.xlu0 %760
    %v763 = vmul.f32 %v757, %v181
    %v764 = vmul.f32 %v761, %v182
    %767 = vrot.lane.b32.xlu0 %v763, 32
    %v768 = vpop.permute.xlu0 %767
    %769 = vrot.lane.b32.xlu0 %v764, 32
    %v770 = vpop.permute.xlu0 %769
    %v773 = vadd.f32 %v753, %v768
    %v774 = vadd.f32 %v754, %v770
    %v775 = vmax.f32 %v773, 0.0
    %v776 = vmax.f32 %v774, 0.0
    %v777 = vld [vmem:[#allocation2 + $0x58] sm:$0xff]
    %v778 = vld [vmem:[#allocation2 + $0xb8] sm:$0xff]
    %780 = vset.pattern.permute.xlu0 32
    %781 = vperm.xlu0 %780, %v775
    %v782 = vpop.permute.xlu0 %781
    %785 = vset.pattern.permute.xlu0 32
    %786 = vperm.xlu0 %785, %v776
    %v787 = vpop.permute.xlu0 %786
    %v789 = vmul.f32 %v782, %v181
    %v790 = vmul.f32 %v787, %v182
    %v791 = vadd.f32 %v777, %v789
    %v792 = vadd.f32 %v778, %v790
    %793 = vset.pattern.permute.xlu0 33
    %794 = vperm.xlu0 %793, %v775
    %v795 = vpop.permute.xlu0 %794
    %797 = vset.pattern.permute.xlu0 33
    %798 = vperm.xlu0 %797, %v776
    %v799 = vpop.permute.xlu0 %798
    %v801 = vmul.f32 %v795, %v181
    %v802 = vmul.f32 %v799, %v182
    %805 = vrot.lane.b32.xlu0 %v801, 124
    %v806 = vpop.permute.xlu0 %805
    %807 = vrot.lane.b32.xlu0 %v802, 124
    %v808 = vpop.permute.xlu0 %807
    %v811 = vadd.f32 %v791, %v806
    %v812 = vadd.f32 %v792, %v808
    %813 = vset.pattern.permute.xlu0 34
    %814 = vperm.xlu0 %813, %v775
    %v815 = vpop.permute.xlu0 %814
    %817 = vset.pattern.permute.xlu0 34
    %818 = vperm.xlu0 %817, %v776
    %v819 = vpop.permute.xlu0 %818
    %v821 = vmul.f32 %v815, %v181
    %v822 = vmul.f32 %v819, %v182
    %825 = vrot.lane.b32.xlu0 %v821, 120
    %v826 = vpop.permute.xlu0 %825
    %827 = vrot.lane.b32.xlu0 %v822, 120
    %v828 = vpop.permute.xlu0 %827
    %v831 = vadd.f32 %v811, %v826
    %v832 = vadd.f32 %v812, %v828
    %833 = vset.pattern.permute.xlu0 35
    %834 = vperm.xlu0 %833, %v775
    %v835 = vpop.permute.xlu0 %834
    %837 = vset.pattern.permute.xlu0 35
    %838 = vperm.xlu0 %837, %v776
    %v839 = vpop.permute.xlu0 %838
    %v841 = vmul.f32 %v835, %v181
    %v842 = vmul.f32 %v839, %v182
    %845 = vrot.lane.b32.xlu0 %v841, 116
    %v846 = vpop.permute.xlu0 %845
    %847 = vrot.lane.b32.xlu0 %v842, 116
    %v848 = vpop.permute.xlu0 %847
    %v851 = vadd.f32 %v831, %v846
    %v852 = vadd.f32 %v832, %v848
    %853 = vset.pattern.permute.xlu0 36
    %854 = vperm.xlu0 %853, %v775
    %v855 = vpop.permute.xlu0 %854
    %857 = vset.pattern.permute.xlu0 36
    %858 = vperm.xlu0 %857, %v776
    %v859 = vpop.permute.xlu0 %858
    %v861 = vmul.f32 %v855, %v181
    %v862 = vmul.f32 %v859, %v182
    %865 = vrot.lane.b32.xlu0 %v861, 112
    %v866 = vpop.permute.xlu0 %865
    %867 = vrot.lane.b32.xlu0 %v862, 112
    %v868 = vpop.permute.xlu0 %867
    %v871 = vadd.f32 %v851, %v866
    %v872 = vadd.f32 %v852, %v868
    %873 = vset.pattern.permute.xlu0 37
    %874 = vperm.xlu0 %873, %v775
    %v875 = vpop.permute.xlu0 %874
    %877 = vset.pattern.permute.xlu0 37
    %878 = vperm.xlu0 %877, %v776
    %v879 = vpop.permute.xlu0 %878
    %v881 = vmul.f32 %v875, %v181
    %v882 = vmul.f32 %v879, %v182
    %885 = vrot.lane.b32.xlu0 %v881, 108
    %v886 = vpop.permute.xlu0 %885
    %887 = vrot.lane.b32.xlu0 %v882, 108
    %v888 = vpop.permute.xlu0 %887
    %v891 = vadd.f32 %v871, %v886
    %v892 = vadd.f32 %v872, %v888
    %893 = vset.pattern.permute.xlu0 38
    %894 = vperm.xlu0 %893, %v775
    %v895 = vpop.permute.xlu0 %894
    %897 = vset.pattern.permute.xlu0 38
    %898 = vperm.xlu0 %897, %v776
    %v899 = vpop.permute.xlu0 %898
    %v901 = vmul.f32 %v895, %v181
    %v902 = vmul.f32 %v899, %v182
    %905 = vrot.lane.b32.xlu0 %v901, 104
    %v906 = vpop.permute.xlu0 %905
    %907 = vrot.lane.b32.xlu0 %v902, 104
    %v908 = vpop.permute.xlu0 %907
    %v911 = vadd.f32 %v891, %v906
    %v912 = vadd.f32 %v892, %v908
    %913 = vset.pattern.permute.xlu0 39
    %914 = vperm.xlu0 %913, %v775
    %v915 = vpop.permute.xlu0 %914
    %917 = vset.pattern.permute.xlu0 39
    %918 = vperm.xlu0 %917, %v776
    %v919 = vpop.permute.xlu0 %918
    %v921 = vmul.f32 %v915, %v181
    %v922 = vmul.f32 %v919, %v182
    %925 = vrot.lane.b32.xlu0 %v921, 100
    %v926 = vpop.permute.xlu0 %925
    %927 = vrot.lane.b32.xlu0 %v922, 100
    %v928 = vpop.permute.xlu0 %927
    %v931 = vadd.f32 %v911, %v926
    %v932 = vadd.f32 %v912, %v928
    %933 = vset.pattern.permute.xlu0 40
    %934 = vperm.xlu0 %933, %v775
    %v935 = vpop.permute.xlu0 %934
    %937 = vset.pattern.permute.xlu0 40
    %938 = vperm.xlu0 %937, %v776
    %v939 = vpop.permute.xlu0 %938
    %v941 = vmul.f32 %v935, %v181
    %v942 = vmul.f32 %v939, %v182
    %945 = vrot.lane.b32.xlu0 %v941, 96
    %v946 = vpop.permute.xlu0 %945
    %947 = vrot.lane.b32.xlu0 %v942, 96
    %v948 = vpop.permute.xlu0 %947
    %v951 = vadd.f32 %v931, %v946
    %v952 = vadd.f32 %v932, %v948
    %953 = vset.pattern.permute.xlu0 41
    %954 = vperm.xlu0 %953, %v775
    %v955 = vpop.permute.xlu0 %954
    %957 = vset.pattern.permute.xlu0 41
    %958 = vperm.xlu0 %957, %v776
    %v959 = vpop.permute.xlu0 %958
    %v961 = vmul.f32 %v955, %v181
    %v962 = vmul.f32 %v959, %v182
    %965 = vrot.lane.b32.xlu0 %v961, 92
    %v966 = vpop.permute.xlu0 %965
    %967 = vrot.lane.b32.xlu0 %v962, 92
    %v968 = vpop.permute.xlu0 %967
    %v971 = vadd.f32 %v951, %v966
    %v972 = vadd.f32 %v952, %v968
    %973 = vset.pattern.permute.xlu0 42
    %974 = vperm.xlu0 %973, %v775
    %v975 = vpop.permute.xlu0 %974
    %977 = vset.pattern.permute.xlu0 42
    %978 = vperm.xlu0 %977, %v776
    %v979 = vpop.permute.xlu0 %978
    %v981 = vmul.f32 %v975, %v181
    %v982 = vmul.f32 %v979, %v182
    %985 = vrot.lane.b32.xlu0 %v981, 88
    %v986 = vpop.permute.xlu0 %985
    %987 = vrot.lane.b32.xlu0 %v982, 88
    %v988 = vpop.permute.xlu0 %987
    %v991 = vadd.f32 %v971, %v986
    %v992 = vadd.f32 %v972, %v988
    %993 = vset.pattern.permute.xlu0 43
    %994 = vperm.xlu0 %993, %v775
    %v995 = vpop.permute.xlu0 %994
    %997 = vset.pattern.permute.xlu0 43
    %998 = vperm.xlu0 %997, %v776
    %v999 = vpop.permute.xlu0 %998
    %v1001 = vmul.f32 %v995, %v181
    %v1002 = vmul.f32 %v999, %v182
    %1005 = vrot.lane.b32.xlu0 %v1001, 84
    %v1006 = vpop.permute.xlu0 %1005
    %1007 = vrot.lane.b32.xlu0 %v1002, 84
    %v1008 = vpop.permute.xlu0 %1007
    %v1011 = vadd.f32 %v991, %v1006
    %v1012 = vadd.f32 %v992, %v1008
    %1013 = vset.pattern.permute.xlu0 44
    %1014 = vperm.xlu0 %1013, %v775
    %v1015 = vpop.permute.xlu0 %1014
    %1017 = vset.pattern.permute.xlu0 44
    %1018 = vperm.xlu0 %1017, %v776
    %v1019 = vpop.permute.xlu0 %1018
    %v1021 = vmul.f32 %v1015, %v181
    %v1022 = vmul.f32 %v1019, %v182
    %1025 = vrot.lane.b32.xlu0 %v1021, 80
    %v1026 = vpop.permute.xlu0 %1025
    %1027 = vrot.lane.b32.xlu0 %v1022, 80
    %v1028 = vpop.permute.xlu0 %1027
    %v1031 = vadd.f32 %v1011, %v1026
    %v1032 = vadd.f32 %v1012, %v1028
    %1033 = vset.pattern.permute.xlu0 45
    %1034 = vperm.xlu0 %1033, %v775
    %v1035 = vpop.permute.xlu0 %1034
    %1037 = vset.pattern.permute.xlu0 45
    %1038 = vperm.xlu0 %1037, %v776
    %v1039 = vpop.permute.xlu0 %1038
    %v1041 = vmul.f32 %v1035, %v181
    %v1042 = vmul.f32 %v1039, %v182
    %1045 = vrot.lane.b32.xlu0 %v1041, 76
    %v1046 = vpop.permute.xlu0 %1045
    %1047 = vrot.lane.b32.xlu0 %v1042, 76
    %v1048 = vpop.permute.xlu0 %1047
    %v1051 = vadd.f32 %v1031, %v1046
    %v1052 = vadd.f32 %v1032, %v1048
    %1053 = vset.pattern.permute.xlu0 46
    %1054 = vperm.xlu0 %1053, %v775
    %v1055 = vpop.permute.xlu0 %1054
    %1057 = vset.pattern.permute.xlu0 46
    %1058 = vperm.xlu0 %1057, %v776
    %v1059 = vpop.permute.xlu0 %1058
    %v1061 = vmul.f32 %v1055, %v181
    %v1062 = vmul.f32 %v1059, %v182
    %1065 = vrot.lane.b32.xlu0 %v1061, 72
    %v1066 = vpop.permute.xlu0 %1065
    %1067 = vrot.lane.b32.xlu0 %v1062, 72
    %v1068 = vpop.permute.xlu0 %1067
    %v1071 = vadd.f32 %v1051, %v1066
    %v1072 = vadd.f32 %v1052, %v1068
    %1073 = vset.pattern.permute.xlu0 47
    %1074 = vperm.xlu0 %1073, %v775
    %v1075 = vpop.permute.xlu0 %1074
    %1077 = vset.pattern.permute.xlu0 47
    %1078 = vperm.xlu0 %1077, %v776
    %v1079 = vpop.permute.xlu0 %1078
    %v1081 = vmul.f32 %v1075, %v181
    %v1082 = vmul.f32 %v1079, %v182
    %1085 = vrot.lane.b32.xlu0 %v1081, 68
    %v1086 = vpop.permute.xlu0 %1085
    %1087 = vrot.lane.b32.xlu0 %v1082, 68
    %v1088 = vpop.permute.xlu0 %1087
    %v1091 = vadd.f32 %v1071, %v1086
    %v1092 = vadd.f32 %v1072, %v1088
    %1093 = vset.pattern.permute.xlu0 48
    %1094 = vperm.xlu0 %1093, %v775
    %v1095 = vpop.permute.xlu0 %1094
    %1097 = vset.pattern.permute.xlu0 48
    %1098 = vperm.xlu0 %1097, %v776
    %v1099 = vpop.permute.xlu0 %1098
    %v1101 = vmul.f32 %v1095, %v777
    %v1102 = vmul.f32 %v1099, %v778
    %1105 = vrot.lane.b32.xlu0 %v1101, 64
    %v1106 = vpop.permute.xlu0 %1105
    %1107 = vrot.lane.b32.xlu0 %v1102, 64
    %v1108 = vpop.permute.xlu0 %1107
    %v1111 = vadd.f32 %v1091, %v1106
    %v1112 = vadd.f32 %v1092, %v1108
    %1113 = vset.pattern.permute.xlu0 49
    %1114 = vperm.xlu0 %1113, %v775
    %v1115 = vpop.permute.xlu0 %1114
    %1117 = vset.pattern.permute.xlu0 49
    %1118 = vperm.xlu0 %1117, %v776
    %v1119 = vpop.permute.xlu0 %1118
    %v1121 = vmul.f32 %v1115, %v777
    %v1122 = vmul.f32 %v1119, %v778
    %1125 = vrot.lane.b32.xlu0 %v1121, 60
    %v1126 = vpop.permute.xlu0 %1125
    %1127 = vrot.lane.b32.xlu0 %v1122, 60
    %v1128 = vpop.permute.xlu0 %1127
    %v1131 = vadd.f32 %v1111, %v1126
    %v1132 = vadd.f32 %v1112, %v1128
    %1133 = vset.pattern.permute.xlu0 50
    %1134 = vperm.xlu0 %1133, %v775
    %v1135 = vpop.permute.xlu0 %1134
    %1137 = vset.pattern.permute.xlu0 50
    %1138 = vperm.xlu0 %1137, %v776
    %v1139 = vpop.permute.xlu0 %1138
    %v1141 = vmul.f32 %v1135, %v777
    %v1142 = vmul.f32 %v1139, %v778
    %1145 = vrot.lane.b32.xlu0 %v1141, 56
    %v1146 = vpop.permute.xlu0 %1145
    %1147 = vrot.lane.b32.xlu0 %v1142, 56
    %v1148 = vpop.permute.xlu0 %1147
    %v1151 = vadd.f32 %v1131, %v1146
    %v1152 = vadd.f32 %v1132, %v1148
    %1153 = vset.pattern.permute.xlu0 51
    %1154 = vperm.xlu0 %1153, %v775
    %v1155 = vpop.permute.xlu0 %1154
    %1157 = vset.pattern.permute.xlu0 51
    %1158 = vperm.xlu0 %1157, %v776
    %v1159 = vpop.permute.xlu0 %1158
    %v1161 = vmul.f32 %v1155, %v777
    %v1162 = vmul.f32 %v1159, %v778
    %1165 = vrot.lane.b32.xlu0 %v1161, 52
    %v1166 = vpop.permute.xlu0 %1165
    %1167 = vrot.lane.b32.xlu0 %v1162, 52
    %v1168 = vpop.permute.xlu0 %1167
    %v1171 = vadd.f32 %v1151, %v1166
    %v1172 = vadd.f32 %v1152, %v1168
    %1173 = vset.pattern.permute.xlu0 52
    %1174 = vperm.xlu0 %1173, %v775
    %v1175 = vpop.permute.xlu0 %1174
    %1177 = vset.pattern.permute.xlu0 52
    %1178 = vperm.xlu0 %1177, %v776
    %v1179 = vpop.permute.xlu0 %1178
    %v1181 = vmul.f32 %v1175, %v777
    %v1182 = vmul.f32 %v1179, %v778
    %1185 = vrot.lane.b32.xlu0 %v1181, 48
    %v1186 = vpop.permute.xlu0 %1185
    %1187 = vrot.lane.b32.xlu0 %v1182, 48
    %v1188 = vpop.permute.xlu0 %1187
    %v1191 = vadd.f32 %v1171, %v1186
    %v1192 = vadd.f32 %v1172, %v1188
    %1193 = vset.pattern.permute.xlu0 53
    %1194 = vperm.xlu0 %1193, %v775
    %v1195 = vpop.permute.xlu0 %1194
    %1197 = vset.pattern.permute.xlu0 53
    %1198 = vperm.xlu0 %1197, %v776
    %v1199 = vpop.permute.xlu0 %1198
    %v1201 = vmul.f32 %v1195, %v777
    %v1202 = vmul.f32 %v1199, %v778
    %1205 = vrot.lane.b32.xlu0 %v1201, 44
    %v1206 = vpop.permute.xlu0 %1205
    %1207 = vrot.lane.b32.xlu0 %v1202, 44
    %v1208 = vpop.permute.xlu0 %1207
    %v1211 = vadd.f32 %v1191, %v1206
    %v1212 = vadd.f32 %v1192, %v1208
    %1213 = vset.pattern.permute.xlu0 54
    %1214 = vperm.xlu0 %1213, %v775
    %v1215 = vpop.permute.xlu0 %1214
    %1217 = vset.pattern.permute.xlu0 54
    %1218 = vperm.xlu0 %1217, %v776
    %v1219 = vpop.permute.xlu0 %1218
    %v1221 = vmul.f32 %v1215, %v777
    %v1222 = vmul.f32 %v1219, %v778
    %1225 = vrot.lane.b32.xlu0 %v1221, 40
    %v1226 = vpop.permute.xlu0 %1225
    %1227 = vrot.lane.b32.xlu0 %v1222, 40
    %v1228 = vpop.permute.xlu0 %1227
    %v1231 = vadd.f32 %v1211, %v1226
    %v1232 = vadd.f32 %v1212, %v1228
    %1233 = vset.pattern.permute.xlu0 55
    %1234 = vperm.xlu0 %1233, %v775
    %v1235 = vpop.permute.xlu0 %1234
    %1237 = vset.pattern.permute.xlu0 55
    %1238 = vperm.xlu0 %1237, %v776
    %v1239 = vpop.permute.xlu0 %1238
    %v1241 = vmul.f32 %v1235, %v777
    %v1242 = vmul.f32 %v1239, %v778
    %1245 = vrot.lane.b32.xlu0 %v1241, 36
    %v1246 = vpop.permute.xlu0 %1245
    %1247 = vrot.lane.b32.xlu0 %v1242, 36
    %v1248 = vpop.permute.xlu0 %1247
    %v1251 = vadd.f32 %v1231, %v1246
    %v1252 = vadd.f32 %v1232, %v1248
    %1253 = vset.pattern.permute.xlu0 56
    %1254 = vperm.xlu0 %1253, %v775
    %v1255 = vpop.permute.xlu0 %1254
    %1257 = vset.pattern.permute.xlu0 56
    %1258 = vperm.xlu0 %1257, %v776
    %v1259 = vpop.permute.xlu0 %1258
    %v1261 = vmul.f32 %v1255, %v777
    %v1262 = vmul.f32 %v1259, %v778
    %1265 = vrot.lane.b32.xlu0 %v1261, 32
    %v1266 = vpop.permute.xlu0 %1265
    %1267 = vrot.lane.b32.xlu0 %v1262, 32
    %v1268 = vpop.permute.xlu0 %1267
    %v1271 = vadd.f32 %v1251, %v1266
    %v1272 = vadd.f32 %v1252, %v1268
    %1273 = vset.pattern.permute.xlu0 57
    %1274 = vperm.xlu0 %1273, %v775
    %v1275 = vpop.permute.xlu0 %1274
    %1277 = vset.pattern.permute.xlu0 57
    %1278 = vperm.xlu0 %1277, %v776
    %v1279 = vpop.permute.xlu0 %1278
    %v1281 = vmul.f32 %v1275, %v777
    %v1282 = vmul.f32 %v1279, %v778
    %1285 = vrot.lane.b32.xlu0 %v1281, 28
    %v1286 = vpop.permute.xlu0 %1285
    %1287 = vrot.lane.b32.xlu0 %v1282, 28
    %v1288 = vpop.permute.xlu0 %1287
    %v1291 = vadd.f32 %v1271, %v1286
    %v1292 = vadd.f32 %v1272, %v1288
    %1293 = vset.pattern.permute.xlu0 58
    %1294 = vperm.xlu0 %1293, %v775
    %v1295 = vpop.permute.xlu0 %1294
    %1297 = vset.pattern.permute.xlu0 58
    %1298 = vperm.xlu0 %1297, %v776
    %v1299 = vpop.permute.xlu0 %1298
    %v1301 = vmul.f32 %v1295, %v777
    %v1302 = vmul.f32 %v1299, %v778
    %1305 = vrot.lane.b32.xlu0 %v1301, 24
    %v1306 = vpop.permute.xlu0 %1305
    %1307 = vrot.lane.b32.xlu0 %v1302, 24
    %v1308 = vpop.permute.xlu0 %1307
    %v1311 = vadd.f32 %v1291, %v1306
    %v1312 = vadd.f32 %v1292, %v1308
    %1313 = vset.pattern.permute.xlu0 59
    %1314 = vperm.xlu0 %1313, %v775
    %v1315 = vpop.permute.xlu0 %1314
    %1317 = vset.pattern.permute.xlu0 59
    %1318 = vperm.xlu0 %1317, %v776
    %v1319 = vpop.permute.xlu0 %1318
    %v1321 = vmul.f32 %v1315, %v777
    %v1322 = vmul.f32 %v1319, %v778
    %1325 = vrot.lane.b32.xlu0 %v1321, 20
    %v1326 = vpop.permute.xlu0 %1325
    %1327 = vrot.lane.b32.xlu0 %v1322, 20
    %v1328 = vpop.permute.xlu0 %1327
    %v1331 = vadd.f32 %v1311, %v1326
    %v1332 = vadd.f32 %v1312, %v1328
    %1333 = vset.pattern.permute.xlu0 60
    %1334 = vperm.xlu0 %1333, %v775
    %v1335 = vpop.permute.xlu0 %1334
    %1337 = vset.pattern.permute.xlu0 60
    %1338 = vperm.xlu0 %1337, %v776
    %v1339 = vpop.permute.xlu0 %1338
    %v1341 = vmul.f32 %v1335, %v777
    %v1342 = vmul.f32 %v1339, %v778
    %1345 = vrot.lane.b32.xlu0 %v1341, 16
    %v1346 = vpop.permute.xlu0 %1345
    %1347 = vrot.lane.b32.xlu0 %v1342, 16
    %v1348 = vpop.permute.xlu0 %1347
    %v1351 = vadd.f32 %v1331, %v1346
    %v1352 = vadd.f32 %v1332, %v1348
    %1353 = vset.pattern.permute.xlu0 61
    %1354 = vperm.xlu0 %1353, %v775
    %v1355 = vpop.permute.xlu0 %1354
    %1357 = vset.pattern.permute.xlu0 61
    %1358 = vperm.xlu0 %1357, %v776
    %v1359 = vpop.permute.xlu0 %1358
    %v1361 = vmul.f32 %v1355, %v777
    %v1362 = vmul.f32 %v1359, %v778
    %1365 = vrot.lane.b32.xlu0 %v1361, 12
    %v1366 = vpop.permute.xlu0 %1365
    %1367 = vrot.lane.b32.xlu0 %v1362, 12
    %v1368 = vpop.permute.xlu0 %1367
    %v1371 = vadd.f32 %v1351, %v1366
    %v1372 = vadd.f32 %v1352, %v1368
    %1373 = vset.pattern.permute.xlu0 62
    %1374 = vperm.xlu0 %1373, %v775
    %v1375 = vpop.permute.xlu0 %1374
    %1377 = vset.pattern.permute.xlu0 62
    %1378 = vperm.xlu0 %1377, %v776
    %v1379 = vpop.permute.xlu0 %1378
    %v1381 = vmul.f32 %v1375, %v777
    %v1382 = vmul.f32 %v1379, %v778
    %1385 = vrot.lane.b32.xlu0 %v1381, 8
    %v1386 = vpop.permute.xlu0 %1385
    %1387 = vrot.lane.b32.xlu0 %v1382, 8
    %v1388 = vpop.permute.xlu0 %1387
    %v1391 = vadd.f32 %v1371, %v1386
    %v1392 = vadd.f32 %v1372, %v1388
    %1393 = vset.pattern.permute.xlu0 63
    %1394 = vperm.xlu0 %1393, %v775
    %v1395 = vpop.permute.xlu0 %1394
    %1397 = vset.pattern.permute.xlu0 63
    %1398 = vperm.xlu0 %1397, %v776
    %v1399 = vpop.permute.xlu0 %1398
    %v1401 = vmul.f32 %v1395, %v777
    %v1402 = vmul.f32 %v1399, %v778
    %1405 = vrot.lane.b32.xlu0 %v1401, 4
    %v1406 = vpop.permute.xlu0 %1405
    %1407 = vrot.lane.b32.xlu0 %v1402, 4
    %v1408 = vpop.permute.xlu0 %1407
    %v1411 = vadd.f32 %v1391, %v1406
    %v1412 = vadd.f32 %v1392, %v1408
    %1415 = vrot.lane.b32.xlu0 %v1411, 64
    %v1416 = vpop.permute.xlu0 %1415
    %1417 = vrot.lane.b32.xlu0 %v1412, 64
    %v1418 = vpop.permute.xlu0 %1417
    %vm1421 = vcmask 31744
    %1422 = vst.msk [vmem:[%s2] sm:$0xff] %vm1421, %v1416
    %1423 = vst.msk [vmem:[%s2 + $0x8] sm:$0xff] %vm1421, %v1418
    // Predicated region
    $region14: #{tpu_custom_call.1} parent=1 // pred_check
      _
    $region15: #{tpu_custom_call.1} parent=1 // pred_check_branch
      %1425 = sbr.rel (0) target = $region17
    $region16: #{tpu_custom_call.1} parent=1 // pred_region
      _
    $region17: #{tpu_custom_call.1} parent=1 // pred_fallthru
      _
    // Predicated region
    $region18: #{tpu_custom_call.1} parent=1 // pred_check
      _
    $region19: #{tpu_custom_call.1} parent=1 // pred_check_branch
      %1427 = sbr.rel (0) target = $region21
    $region20: #{tpu_custom_call.1} parent=1 // pred_region
      _
    $region21: #{tpu_custom_call.1} parent=1 // pred_fallthru
      _
    %1428 = vsyncpa [#allocation3], 1

</llo_original>
